<compile_context>
chip_gen: v7x
topology: tpu7x:2x2x1
jax: 0.10.0
libtpu: 0.0.40
codegen_flags: <defaults>
</compile_context>

<pallas_src>
import functools

import jax
import jax.numpy as jnp
from jax import lax
from jax.experimental import pallas as pl
from jax.experimental.pallas import tpu as pltpu


def _shift_lanes_zero(h, s):
    """shifted[:, m] = h[:, m + s] if 0 <= m + s < M else 0  (static s)."""
    if s == 0:
        return h
    c, m = h.shape
    fill = jnp.zeros((c, abs(s)), dtype=h.dtype)
    if s > 0:
        return jnp.concatenate([h[:, s:], fill], axis=1)
    return jnp.concatenate([fill, h[:, :m + s]], axis=1)


def _residual_stack_kernel(x_ref, w1_ref, w2_ref, o_ref, *,
                           B, H, W, Cin, Crh, Cout, L, mxu_dtype):
    # x_ref : (B, Cin,  H*W)   channel-major, lane-dense (lane dim = H*W)
    # w1_ref: (L, 9, Crh, Cin) conv3x3 weights, per-tap, pre-transposed
    # w2_ref: (L, Cout, Crh)   conv1x1 weights, pre-transposed
    # o_ref : (B, Cout, H*W)
    HW = H * W
    f32 = jnp.float32

    # Column index of every flat position; used to pre-mask the two
    # horizontally shifted activation variants (SAME zero padding in x).
    col = lax.broadcasted_iota(jnp.int32, (1, HW), 1) % W
    not_first_col = col != 0          # valid sources for dx = +1 taps
    not_last_col = col != (W - 1)     # valid sources for dx = -1 taps

    for b in range(B):                # b_tile small; unrolled
        x = x_ref[b].astype(f32)      # (Cin, HW) residual accumulator (f32)

        # TODO(synk): for deep stacks (large L) switch this Python unroll to
        # lax.fori_loop with dynamic w1_ref[l]/w2_ref[l] indexing to bound
        # vreg live ranges; L=2 here so static unroll is fine.
        for l in range(L):
            h = jnp.maximum(x, 0.0).astype(mxu_dtype)        # ReLU (f32 VPU)
            # Pre-masked horizontal variants: zero the column that would wrap
            # into the neighbouring row after a +-1 lane shift.
            h_dx = {
                0: h,
                1: jnp.where(not_first_col, h, jnp.zeros_like(h)),
                -1: jnp.where(not_last_col, h, jnp.zeros_like(h)),
            }

            # conv3x3 as 9 accumulating (Crh,Cin)@(Cin,HW) MXU matmuls; every
            # operand/result has HW in the lane dim (lane-dense, no im2col).
            z = jnp.zeros((Crh, HW), dtype=f32)
            for k in range(9):
                ky, kx = divmod(k, 3)
                dy, dx = ky - 1, kx - 1
                hk = _shift_lanes_zero(h_dx[dx], dy * W + dx)
                z = z + jnp.dot(w1_ref[l, k], hk,
                                preferred_element_type=f32)

            z = jnp.maximum(z, 0.0)                          # ReLU
            y = jnp.dot(w2_ref[l], z.astype(mxu_dtype),      # conv1x1
                        preferred_element_type=f32)
            x = x + y                                        # residual add

        # Stack-final ReLU; lane-dense store (lane dim = H*W).
        o_ref[b] = jnp.maximum(x, 0.0).astype(o_ref.dtype)


def residual_stack_pallas(x_nchw, w1_packed, w2_packed, *, b_tile=1):
    """x_nchw: (N,Cin,H,W); w1_packed: (L,9,Crh,Cin); w2_packed: (L,Cout,Crh).

    Keep N // b_tile >= 2 on v7x (two TensorCores); raise b_tile above 1 when
    N allows to amortize per-grid-step overhead and enlarge DMA blocks.
    """
    N, Cin, H, W = x_nchw.shape
    L, nine, Crh, Cin2 = w1_packed.shape
    Cout = w2_packed.shape[1]
    assert nine == 9 and Cin2 == Cin
    assert Cout == Cin, "residual add requires in_channels == num_hiddens"
    assert N % b_tile == 0
    assert (H * W) % 128 == 0, "lane dim H*W should be a multiple of 128"

    HW = H * W
    # Channel-major, lane-dense presentation: free reshape of NCHW.
    x_flat = x_nchw.reshape(N, Cin, HW)

    kernel = functools.partial(
        _residual_stack_kernel,
        B=b_tile, H=H, W=W, Cin=Cin, Crh=Crh, Cout=Cout, L=L,
        mxu_dtype=w1_packed.dtype)

    flops = 2 * N * L * HW * (9 * Cin * Crh + Crh * Cout)
    bytes_accessed = (x_flat.size * x_flat.dtype.itemsize
                      + N * Cout * HW * x_flat.dtype.itemsize
                      + w1_packed.size * w1_packed.dtype.itemsize
                      + w2_packed.size * w2_packed.dtype.itemsize)

    out_flat = pl.pallas_call(
        kernel,
        out_shape=jax.ShapeDtypeStruct((N, Cout, HW), x_nchw.dtype),
        grid_spec=pltpu.PrefetchScalarGridSpec(
            num_scalar_prefetch=0,
            grid=(N // b_tile,),
            in_specs=[
                pl.BlockSpec((b_tile, Cin, HW), lambda n: (n, 0, 0)),
                pl.BlockSpec((L, 9, Crh, Cin), lambda n: (0, 0, 0, 0)),
                pl.BlockSpec((L, Cout, Crh), lambda n: (0, 0, 0)),
            ],
            out_specs=pl.BlockSpec((b_tile, Cout, HW), lambda n: (n, 0, 0)),
        ),
        compiler_params=pltpu.CompilerParams(
            dimension_semantics=("parallel",)),
        cost_estimate=pl.CostEstimate(
            flops=flops, transcendentals=0, bytes_accessed=bytes_accessed),
    )(x_flat, w1_packed, w2_packed)

    return out_flat.reshape(N, Cout, H, W)


def pack_weights(w1_torch_list, w2_torch_list, dtype=jnp.float32):
    """PyTorch-layout weights -> transposed per-tap layout for the kernel.

    conv3x3 (Crh,Cin,3,3) -> (3,3,Crh,Cin) -> (9,Crh,Cin), stacked (L,9,Crh,Cin)
    conv1x1 (Cout,Crh,1,1) -> (Cout,Crh),                  stacked (L,Cout,Crh)
    """
    w1p = jnp.stack([
        jnp.transpose(w, (2, 3, 0, 1)).reshape(9, w.shape[0], w.shape[1])
        for w in w1_torch_list]).astype(dtype)
    w2p = jnp.stack([w[:, :, 0, 0] for w in w2_torch_list]).astype(dtype)
    return w1p, w2p


def residual_stack_reference(x_nchw, w1_torch_list, w2_torch_list):
    """Pure-JAX reference mirroring the PyTorch forward (NCHW / OIHW)."""
    x = x_nchw
    for w1, w2 in zip(w1_torch_list, w2_torch_list):
        h = jax.nn.relu(x)
        c1 = lax.conv_general_dilated(
            h, w1, (1, 1), "SAME",
            dimension_numbers=("NCHW", "OIHW", "NCHW"),
            precision=lax.Precision.HIGHEST)
        h2 = jax.nn.relu(c1)
        c2 = lax.conv_general_dilated(
            h2, w2, (1, 1), "SAME",
            dimension_numbers=("NCHW", "OIHW", "NCHW"),
            precision=lax.Precision.HIGHEST)
        x = x + c2
    return jax.nn.relu(x)


if __name__ == "__main__":
    # module hyperparams (in_channels == num_hiddens, as in VQ-VAE)
    N, H, W = 2, 16, 16
    in_channels = num_hiddens = 32
    num_residual_hiddens = 16
    num_residual_layers = 2

    key = jax.random.PRNGKey(0)
    kx, *wkeys = jax.random.split(key, 1 + 2 * num_residual_layers)

    # PyTorch NCHW input — consumed directly (channel-major == lane-dense).
    x_nchw = jax.random.normal(kx, (N, in_channels, H, W), dtype=jnp.float32)

    # Deterministic synthetic PyTorch-layout weights.
    w1_torch_list, w2_torch_list = [], []
    for i in range(num_residual_layers):
        w1_torch_list.append(0.1 * jax.random.normal(
            wkeys[2 * i], (num_residual_hiddens, in_channels, 3, 3),
            dtype=jnp.float32))
        w2_torch_list.append(0.1 * jax.random.normal(
            wkeys[2 * i + 1], (num_hiddens, num_residual_hiddens, 1, 1),
            dtype=jnp.float32))

    ref = residual_stack_reference(x_nchw, w1_torch_list, w2_torch_list)

    # ---- f32 path (tight reference check). b_tile=1 keeps grid=2 (v7x). ----
    w1p, w2p = pack_weights(w1_torch_list, w2_torch_list, jnp.float32)
    out = residual_stack_pallas(x_nchw, w1p, w2p, b_tile=1)
    out = jax.block_until_ready(out)
    assert out.shape == (N, num_hiddens, H, W)
    max_err = float(jnp.max(jnp.abs(out - ref)))
    assert jnp.allclose(out, ref, atol=1e-4, rtol=1e-4), max_err

    # ---- bf16 MXU / bf16 I/O path (v6e/v7x): halves DMA bytes & VMEM. ----
    w1b, w2b = pack_weights(w1_torch_list, w2_torch_list, jnp.bfloat16)
    out_bf16 = residual_stack_pallas(
        x_nchw.astype(jnp.bfloat16), w1b, w2b, b_tile=1)
    out_bf16 = jax.block_until_ready(out_bf16).astype(jnp.float32)
    max_err_bf16 = float(jnp.max(jnp.abs(out_bf16 - ref)))
    assert max_err_bf16 < 0.25, max_err_bf16

    print("KERNEL_OK")
</pallas_src>

<mosaic_0001>
module attributes {stable_mosaic.version = 11 : i64} {
  func.func @_residual_stack_kernel(%arg0: i32, %arg1: memref<1x32x256xf32, #tpu.memory_space<vmem>>, %arg2: memref<2x9x16x32xf32, #tpu.memory_space<vmem>>, %arg3: memref<2x32x16xf32, #tpu.memory_space<vmem>>, %arg4: memref<1x32x256xf32, #tpu.memory_space<vmem>>) attributes {dimension_semantics = [#tpu.dimension_semantics<parallel>], iteration_bounds = array<i64: 2>, scalar_prefetch = 0 : i64, scratch_operands = 0 : i64, tpu.core_type = #tpu.core_type<tc>, window_params = [{transform_indices = @transform_0, window_bounds = array<i64: 1, 32, 256>}, {pipeline_mode = #tpu.pipeline_mode<synchronous>, transform_indices = @transform_1, window_bounds = array<i64: 2, 9, 16, 32>}, {pipeline_mode = #tpu.pipeline_mode<synchronous>, transform_indices = @transform_2, window_bounds = array<i64: 2, 32, 16>}, {transform_indices = @transform_3, window_bounds = array<i64: 1, 32, 256>}]} {
    %0 = tpu.iota {dimensions = array<i32: 1>} : vector<1x256xi32>
    %c16_i32 = arith.constant 16 : i32
    %c0_i32 = arith.constant 0 : i32
    %1 = arith.cmpi eq, %c16_i32, %c0_i32 : i32
    %c1_i32 = arith.constant 1 : i32
    %2 = arith.select %1, %c1_i32, %c16_i32 : i32
    %3 = vector.broadcast %2 : i32 to vector<1x256xi32>
    %4 = arith.remsi %0, %3 : vector<1x256xi32>
    %c0_i32_0 = arith.constant 0 : i32
    %5 = vector.broadcast %c0_i32_0 : i32 to vector<1x256xi32>
    %6 = arith.cmpi ne, %4, %5 : vector<1x256xi32>
    %c0_i32_1 = arith.constant 0 : i32
    %7 = vector.broadcast %c0_i32_1 : i32 to vector<1x256xi32>
    %8 = arith.cmpi slt, %4, %7 : vector<1x256xi32>
    %c0_i32_2 = arith.constant 0 : i32
    %9 = arith.cmpi slt, %2, %c0_i32_2 : i32
    %10 = vector.broadcast %9 : i1 to vector<1x256xi1>
    %11 = vector.broadcast %10 : vector<1x256xi1> to vector<1x256xi1>
    %12 = arith.xori %8, %11 : vector<1x256xi1>
    %13 = arith.andi %12, %6 : vector<1x256xi1>
    %14 = vector.broadcast %2 : i32 to vector<1x256xi32>
    %15 = arith.addi %4, %14 : vector<1x256xi32>
    %16 = arith.select %13, %15, %4 : vector<1x256xi1>, vector<1x256xi32>
    %c0_i32_3 = arith.constant 0 : i32
    %17 = vector.broadcast %c0_i32_3 : i32 to vector<1x256xi32>
    %18 = arith.cmpi ne, %16, %17 : vector<1x256xi32>
    %c15_i32 = arith.constant 15 : i32
    %19 = vector.broadcast %c15_i32 : i32 to vector<1x256xi32>
    %20 = arith.cmpi ne, %16, %19 : vector<1x256xi32>
    %c0 = arith.constant 0 : index
    %c0_4 = arith.constant 0 : index
    %c0_5 = arith.constant 0 : index
    %21 = vector.load %arg1[%c0, %c0_4, %c0_5] : memref<1x32x256xf32, #tpu.memory_space<vmem>>, vector<1x32x256xf32>
    %22 = vector.shape_cast %21 : vector<1x32x256xf32> to vector<32x256xf32>
    %cst = arith.constant 0.000000e+00 : f32
    %23 = vector.broadcast %cst : f32 to vector<32x256xf32>
    %24 = arith.maximumf %22, %23 : vector<32x256xf32>
    %cst_6 = arith.constant 0.000000e+00 : f32
    %25 = vector.broadcast %cst_6 : f32 to vector<32x256xf32>
    %26 = vector.shape_cast %18 : vector<1x256xi1> to vector<1x256xi1>
    %27 = vector.broadcast %26 : vector<1x256xi1> to vector<32x256xi1>
    %28 = arith.select %27, %24, %25 : vector<32x256xi1>, vector<32x256xf32>
    %cst_7 = arith.constant 0.000000e+00 : f32
    %29 = vector.broadcast %cst_7 : f32 to vector<32x256xf32>
    %30 = vector.shape_cast %20 : vector<1x256xi1> to vector<1x256xi1>
    %31 = vector.broadcast %30 : vector<1x256xi1> to vector<32x256xi1>
    %32 = arith.select %31, %24, %29 : vector<32x256xi1>, vector<32x256xf32>
    %cst_8 = arith.constant 0.000000e+00 : f32
    %33 = vector.broadcast %cst_8 : f32 to vector<16x256xf32>
    %cst_9 = arith.constant 0.000000e+00 : f32
    %34 = vector.broadcast %cst_9 : f32 to vector<32x17xf32>
    %35 = vector.extract_strided_slice %32 {offsets = [0, 0], sizes = [32, 239], strides = [1, 1]} : vector<32x256xf32> to vector<32x239xf32>
    %36 = tpu.concatenate %34, %35 in 1 : vector<32x17xf32>, vector<32x239xf32> -> vector<32x256xf32>
    %c0_10 = arith.constant 0 : index
    %c0_11 = arith.constant 0 : index
    %c0_12 = arith.constant 0 : index
    %c0_13 = arith.constant 0 : index
    %37 = vector.load %arg2[%c0_10, %c0_11, %c0_12, %c0_13] : memref<2x9x16x32xf32, #tpu.memory_space<vmem>>, vector<1x1x16x32xf32>
    %38 = vector.shape_cast %37 : vector<1x1x16x32xf32> to vector<16x32xf32>
    %cst_14 = arith.constant dense<0.000000e+00> : vector<16x256xf32>
    %39 = tpu.matmul %38, %36, %cst_14 {dimension_numbers = #tpu.dot_dimension_numbers<[1], [0], [0], [1], [0, 0, 1, 1], [], []>} : vector<16x32xf32>, vector<32x256xf32>, vector<16x256xf32> -> vector<16x256xf32>
    %40 = arith.addf %33, %39 : vector<16x256xf32>
    %cst_15 = arith.constant 0.000000e+00 : f32
    %41 = vector.broadcast %cst_15 : f32 to vector<32x16xf32>
    %42 = vector.extract_strided_slice %24 {offsets = [0, 0], sizes = [32, 240], strides = [1, 1]} : vector<32x256xf32> to vector<32x240xf32>
    %43 = tpu.concatenate %41, %42 in 1 : vector<32x16xf32>, vector<32x240xf32> -> vector<32x256xf32>
    %c0_16 = arith.constant 0 : index
    %c1 = arith.constant 1 : index
    %c0_17 = arith.constant 0 : index
    %c0_18 = arith.constant 0 : index
    %44 = vector.load %arg2[%c0_16, %c1, %c0_17, %c0_18] : memref<2x9x16x32xf32, #tpu.memory_space<vmem>>, vector<1x1x16x32xf32>
    %45 = vector.shape_cast %44 : vector<1x1x16x32xf32> to vector<16x32xf32>
    %cst_19 = arith.constant dense<0.000000e+00> : vector<16x256xf32>
    %46 = tpu.matmul %45, %43, %cst_19 {dimension_numbers = #tpu.dot_dimension_numbers<[1], [0], [0], [1], [0, 0, 1, 1], [], []>} : vector<16x32xf32>, vector<32x256xf32>, vector<16x256xf32> -> vector<16x256xf32>
    %47 = arith.addf %40, %46 : vector<16x256xf32>
    %cst_20 = arith.constant 0.000000e+00 : f32
    %48 = vector.broadcast %cst_20 : f32 to vector<32x15xf32>
    %49 = vector.extract_strided_slice %28 {offsets = [0, 0], sizes = [32, 241], strides = [1, 1]} : vector<32x256xf32> to vector<32x241xf32>
    %50 = tpu.concatenate %48, %49 in 1 : vector<32x15xf32>, vector<32x241xf32> -> vector<32x256xf32>
    %c0_21 = arith.constant 0 : index
    %c2 = arith.constant 2 : index
    %c0_22 = arith.constant 0 : index
    %c0_23 = arith.constant 0 : index
    %51 = vector.load %arg2[%c0_21, %c2, %c0_22, %c0_23] : memref<2x9x16x32xf32, #tpu.memory_space<vmem>>, vector<1x1x16x32xf32>
    %52 = vector.shape_cast %51 : vector<1x1x16x32xf32> to vector<16x32xf32>
    %cst_24 = arith.constant dense<0.000000e+00> : vector<16x256xf32>
    %53 = tpu.matmul %52, %50, %cst_24 {dimension_numbers = #tpu.dot_dimension_numbers<[1], [0], [0], [1], [0, 0, 1, 1], [], []>} : vector<16x32xf32>, vector<32x256xf32>, vector<16x256xf32> -> vector<16x256xf32>
    %54 = arith.addf %47, %53 : vector<16x256xf32>
    %cst_25 = arith.constant 0.000000e+00 : f32
    %55 = vector.broadcast %cst_25 : f32 to vector<32x1xf32>
    %56 = vector.extract_strided_slice %32 {offsets = [0, 0], sizes = [32, 255], strides = [1, 1]} : vector<32x256xf32> to vector<32x255xf32>
    %57 = tpu.concatenate %55, %56 in 1 : vector<32x1xf32>, vector<32x255xf32> -> vector<32x256xf32>
    %c0_26 = arith.constant 0 : index
    %c3 = arith.constant 3 : index
    %c0_27 = arith.constant 0 : index
    %c0_28 = arith.constant 0 : index
    %58 = vector.load %arg2[%c0_26, %c3, %c0_27, %c0_28] : memref<2x9x16x32xf32, #tpu.memory_space<vmem>>, vector<1x1x16x32xf32>
    %59 = vector.shape_cast %58 : vector<1x1x16x32xf32> to vector<16x32xf32>
    %cst_29 = arith.constant dense<0.000000e+00> : vector<16x256xf32>
    %60 = tpu.matmul %59, %57, %cst_29 {dimension_numbers = #tpu.dot_dimension_numbers<[1], [0], [0], [1], [0, 0, 1, 1], [], []>} : vector<16x32xf32>, vector<32x256xf32>, vector<16x256xf32> -> vector<16x256xf32>
    %61 = arith.addf %54, %60 : vector<16x256xf32>
    %c0_30 = arith.constant 0 : index
    %c4 = arith.constant 4 : index
    %c0_31 = arith.constant 0 : index
    %c0_32 = arith.constant 0 : index
    %62 = vector.load %arg2[%c0_30, %c4, %c0_31, %c0_32] : memref<2x9x16x32xf32, #tpu.memory_space<vmem>>, vector<1x1x16x32xf32>
    %63 = vector.shape_cast %62 : vector<1x1x16x32xf32> to vector<16x32xf32>
    %cst_33 = arith.constant dense<0.000000e+00> : vector<16x256xf32>
    %64 = tpu.matmul %63, %24, %cst_33 {dimension_numbers = #tpu.dot_dimension_numbers<[1], [0], [0], [1], [0, 0, 1, 1], [], []>} : vector<16x32xf32>, vector<32x256xf32>, vector<16x256xf32> -> vector<16x256xf32>
    %65 = arith.addf %61, %64 : vector<16x256xf32>
    %cst_34 = arith.constant 0.000000e+00 : f32
    %66 = vector.broadcast %cst_34 : f32 to vector<32x1xf32>
    %67 = vector.extract_strided_slice %28 {offsets = [0, 1], sizes = [32, 255], strides = [1, 1]} : vector<32x256xf32> to vector<32x255xf32>
    %68 = tpu.concatenate %67, %66 in 1 : vector<32x255xf32>, vector<32x1xf32> -> vector<32x256xf32>
    %c0_35 = arith.constant 0 : index
    %c5 = arith.constant 5 : index
    %c0_36 = arith.constant 0 : index
    %c0_37 = arith.constant 0 : index
    %69 = vector.load %arg2[%c0_35, %c5, %c0_36, %c0_37] : memref<2x9x16x32xf32, #tpu.memory_space<vmem>>, vector<1x1x16x32xf32>
    %70 = vector.shape_cast %69 : vector<1x1x16x32xf32> to vector<16x32xf32>
    %cst_38 = arith.constant dense<0.000000e+00> : vector<16x256xf32>
    %71 = tpu.matmul %70, %68, %cst_38 {dimension_numbers = #tpu.dot_dimension_numbers<[1], [0], [0], [1], [0, 0, 1, 1], [], []>} : vector<16x32xf32>, vector<32x256xf32>, vector<16x256xf32> -> vector<16x256xf32>
    %72 = arith.addf %65, %71 : vector<16x256xf32>
    %cst_39 = arith.constant 0.000000e+00 : f32
    %73 = vector.broadcast %cst_39 : f32 to vector<32x15xf32>
    %74 = vector.extract_strided_slice %32 {offsets = [0, 15], sizes = [32, 241], strides = [1, 1]} : vector<32x256xf32> to vector<32x241xf32>
    %75 = tpu.concatenate %74, %73 in 1 : vector<32x241xf32>, vector<32x15xf32> -> vector<32x256xf32>
    %c0_40 = arith.constant 0 : index
    %c6 = arith.constant 6 : index
    %c0_41 = arith.constant 0 : index
    %c0_42 = arith.constant 0 : index
    %76 = vector.load %arg2[%c0_40, %c6, %c0_41, %c0_42] : memref<2x9x16x32xf32, #tpu.memory_space<vmem>>, vector<1x1x16x32xf32>
    %77 = vector.shape_cast %76 : vector<1x1x16x32xf32> to vector<16x32xf32>
    %cst_43 = arith.constant dense<0.000000e+00> : vector<16x256xf32>
    %78 = tpu.matmul %77, %75, %cst_43 {dimension_numbers = #tpu.dot_dimension_numbers<[1], [0], [0], [1], [0, 0, 1, 1], [], []>} : vector<16x32xf32>, vector<32x256xf32>, vector<16x256xf32> -> vector<16x256xf32>
    %79 = arith.addf %72, %78 : vector<16x256xf32>
    %cst_44 = arith.constant 0.000000e+00 : f32
    %80 = vector.broadcast %cst_44 : f32 to vector<32x16xf32>
    %81 = vector.extract_strided_slice %24 {offsets = [0, 16], sizes = [32, 240], strides = [1, 1]} : vector<32x256xf32> to vector<32x240xf32>
    %82 = tpu.concatenate %81, %80 in 1 : vector<32x240xf32>, vector<32x16xf32> -> vector<32x256xf32>
    %c0_45 = arith.constant 0 : index
    %c7 = arith.constant 7 : index
    %c0_46 = arith.constant 0 : index
    %c0_47 = arith.constant 0 : index
    %83 = vector.load %arg2[%c0_45, %c7, %c0_46, %c0_47] : memref<2x9x16x32xf32, #tpu.memory_space<vmem>>, vector<1x1x16x32xf32>
    %84 = vector.shape_cast %83 : vector<1x1x16x32xf32> to vector<16x32xf32>
    %cst_48 = arith.constant dense<0.000000e+00> : vector<16x256xf32>
    %85 = tpu.matmul %84, %82, %cst_48 {dimension_numbers = #tpu.dot_dimension_numbers<[1], [0], [0], [1], [0, 0, 1, 1], [], []>} : vector<16x32xf32>, vector<32x256xf32>, vector<16x256xf32> -> vector<16x256xf32>
    %86 = arith.addf %79, %85 : vector<16x256xf32>
    %cst_49 = arith.constant 0.000000e+00 : f32
    %87 = vector.broadcast %cst_49 : f32 to vector<32x17xf32>
    %88 = vector.extract_strided_slice %28 {offsets = [0, 17], sizes = [32, 239], strides = [1, 1]} : vector<32x256xf32> to vector<32x239xf32>
    %89 = tpu.concatenate %88, %87 in 1 : vector<32x239xf32>, vector<32x17xf32> -> vector<32x256xf32>
    %c0_50 = arith.constant 0 : index
    %c8 = arith.constant 8 : index
    %c0_51 = arith.constant 0 : index
    %c0_52 = arith.constant 0 : index
    %90 = vector.load %arg2[%c0_50, %c8, %c0_51, %c0_52] : memref<2x9x16x32xf32, #tpu.memory_space<vmem>>, vector<1x1x16x32xf32>
    %91 = vector.shape_cast %90 : vector<1x1x16x32xf32> to vector<16x32xf32>
    %cst_53 = arith.constant dense<0.000000e+00> : vector<16x256xf32>
    %92 = tpu.matmul %91, %89, %cst_53 {dimension_numbers = #tpu.dot_dimension_numbers<[1], [0], [0], [1], [0, 0, 1, 1], [], []>} : vector<16x32xf32>, vector<32x256xf32>, vector<16x256xf32> -> vector<16x256xf32>
    %93 = arith.addf %86, %92 : vector<16x256xf32>
    %cst_54 = arith.constant 0.000000e+00 : f32
    %94 = vector.broadcast %cst_54 : f32 to vector<16x256xf32>
    %95 = arith.maximumf %93, %94 : vector<16x256xf32>
    %c0_55 = arith.constant 0 : index
    %c0_56 = arith.constant 0 : index
    %c0_57 = arith.constant 0 : index
    %96 = vector.load %arg3[%c0_55, %c0_56, %c0_57] : memref<2x32x16xf32, #tpu.memory_space<vmem>>, vector<1x32x16xf32>
    %97 = vector.shape_cast %96 : vector<1x32x16xf32> to vector<32x16xf32>
    %cst_58 = arith.constant dense<0.000000e+00> : vector<32x256xf32>
    %98 = tpu.matmul %97, %95, %cst_58 {dimension_numbers = #tpu.dot_dimension_numbers<[1], [0], [0], [1], [0, 0, 1, 1], [], []>} : vector<32x16xf32>, vector<16x256xf32>, vector<32x256xf32> -> vector<32x256xf32>
    %99 = arith.addf %22, %98 : vector<32x256xf32>
    %cst_59 = arith.constant 0.000000e+00 : f32
    %100 = vector.broadcast %cst_59 : f32 to vector<32x256xf32>
    %101 = arith.maximumf %99, %100 : vector<32x256xf32>
    %cst_60 = arith.constant 0.000000e+00 : f32
    %102 = vector.broadcast %cst_60 : f32 to vector<32x256xf32>
    %103 = vector.shape_cast %18 : vector<1x256xi1> to vector<1x256xi1>
    %104 = vector.broadcast %103 : vector<1x256xi1> to vector<32x256xi1>
    %105 = arith.select %104, %101, %102 : vector<32x256xi1>, vector<32x256xf32>
    %cst_61 = arith.constant 0.000000e+00 : f32
    %106 = vector.broadcast %cst_61 : f32 to vector<32x256xf32>
    %107 = vector.shape_cast %20 : vector<1x256xi1> to vector<1x256xi1>
    %108 = vector.broadcast %107 : vector<1x256xi1> to vector<32x256xi1>
    %109 = arith.select %108, %101, %106 : vector<32x256xi1>, vector<32x256xf32>
    %cst_62 = arith.constant 0.000000e+00 : f32
    %110 = vector.broadcast %cst_62 : f32 to vector<16x256xf32>
    %cst_63 = arith.constant 0.000000e+00 : f32
    %111 = vector.broadcast %cst_63 : f32 to vector<32x17xf32>
    %112 = vector.extract_strided_slice %109 {offsets = [0, 0], sizes = [32, 239], strides = [1, 1]} : vector<32x256xf32> to vector<32x239xf32>
    %113 = tpu.concatenate %111, %112 in 1 : vector<32x17xf32>, vector<32x239xf32> -> vector<32x256xf32>
    %c1_64 = arith.constant 1 : index
    %c0_65 = arith.constant 0 : index
    %c0_66 = arith.constant 0 : index
    %c0_67 = arith.constant 0 : index
    %114 = vector.load %arg2[%c1_64, %c0_65, %c0_66, %c0_67] : memref<2x9x16x32xf32, #tpu.memory_space<vmem>>, vector<1x1x16x32xf32>
    %115 = vector.shape_cast %114 : vector<1x1x16x32xf32> to vector<16x32xf32>
    %cst_68 = arith.constant dense<0.000000e+00> : vector<16x256xf32>
    %116 = tpu.matmul %115, %113, %cst_68 {dimension_numbers = #tpu.dot_dimension_numbers<[1], [0], [0], [1], [0, 0, 1, 1], [], []>} : vector<16x32xf32>, vector<32x256xf32>, vector<16x256xf32> -> vector<16x256xf32>
    %117 = arith.addf %110, %116 : vector<16x256xf32>
    %cst_69 = arith.constant 0.000000e+00 : f32
    %118 = vector.broadcast %cst_69 : f32 to vector<32x16xf32>
    %119 = vector.extract_strided_slice %101 {offsets = [0, 0], sizes = [32, 240], strides = [1, 1]} : vector<32x256xf32> to vector<32x240xf32>
    %120 = tpu.concatenate %118, %119 in 1 : vector<32x16xf32>, vector<32x240xf32> -> vector<32x256xf32>
    %c1_70 = arith.constant 1 : index
    %c1_71 = arith.constant 1 : index
    %c0_72 = arith.constant 0 : index
    %c0_73 = arith.constant 0 : index
    %121 = vector.load %arg2[%c1_70, %c1_71, %c0_72, %c0_73] : memref<2x9x16x32xf32, #tpu.memory_space<vmem>>, vector<1x1x16x32xf32>
    %122 = vector.shape_cast %121 : vector<1x1x16x32xf32> to vector<16x32xf32>
    %cst_74 = arith.constant dense<0.000000e+00> : vector<16x256xf32>
    %123 = tpu.matmul %122, %120, %cst_74 {dimension_numbers = #tpu.dot_dimension_numbers<[1], [0], [0], [1], [0, 0, 1, 1], [], []>} : vector<16x32xf32>, vector<32x256xf32>, vector<16x256xf32> -> vector<16x256xf32>
    %124 = arith.addf %117, %123 : vector<16x256xf32>
    %cst_75 = arith.constant 0.000000e+00 : f32
    %125 = vector.broadcast %cst_75 : f32 to vector<32x15xf32>
    %126 = vector.extract_strided_slice %105 {offsets = [0, 0], sizes = [32, 241], strides = [1, 1]} : vector<32x256xf32> to vector<32x241xf32>
    %127 = tpu.concatenate %125, %126 in 1 : vector<32x15xf32>, vector<32x241xf32> -> vector<32x256xf32>
    %c1_76 = arith.constant 1 : index
    %c2_77 = arith.constant 2 : index
    %c0_78 = arith.constant 0 : index
    %c0_79 = arith.constant 0 : index
    %128 = vector.load %arg2[%c1_76, %c2_77, %c0_78, %c0_79] : memref<2x9x16x32xf32, #tpu.memory_space<vmem>>, vector<1x1x16x32xf32>
    %129 = vector.shape_cast %128 : vector<1x1x16x32xf32> to vector<16x32xf32>
    %cst_80 = arith.constant dense<0.000000e+00> : vector<16x256xf32>
    %130 = tpu.matmul %129, %127, %cst_80 {dimension_numbers = #tpu.dot_dimension_numbers<[1], [0], [0], [1], [0, 0, 1, 1], [], []>} : vector<16x32xf32>, vector<32x256xf32>, vector<16x256xf32> -> vector<16x256xf32>
    %131 = arith.addf %124, %130 : vector<16x256xf32>
    %cst_81 = arith.constant 0.000000e+00 : f32
    %132 = vector.broadcast %cst_81 : f32 to vector<32x1xf32>
    %133 = vector.extract_strided_slice %109 {offsets = [0, 0], sizes = [32, 255], strides = [1, 1]} : vector<32x256xf32> to vector<32x255xf32>
    %134 = tpu.concatenate %132, %133 in 1 : vector<32x1xf32>, vector<32x255xf32> -> vector<32x256xf32>
    %c1_82 = arith.constant 1 : index
    %c3_83 = arith.constant 3 : index
    %c0_84 = arith.constant 0 : index
    %c0_85 = arith.constant 0 : index
    %135 = vector.load %arg2[%c1_82, %c3_83, %c0_84, %c0_85] : memref<2x9x16x32xf32, #tpu.memory_space<vmem>>, vector<1x1x16x32xf32>
    %136 = vector.shape_cast %135 : vector<1x1x16x32xf32> to vector<16x32xf32>
    %cst_86 = arith.constant dense<0.000000e+00> : vector<16x256xf32>
    %137 = tpu.matmul %136, %134, %cst_86 {dimension_numbers = #tpu.dot_dimension_numbers<[1], [0], [0], [1], [0, 0, 1, 1], [], []>} : vector<16x32xf32>, vector<32x256xf32>, vector<16x256xf32> -> vector<16x256xf32>
    %138 = arith.addf %131, %137 : vector<16x256xf32>
    %c1_87 = arith.constant 1 : index
    %c4_88 = arith.constant 4 : index
    %c0_89 = arith.constant 0 : index
    %c0_90 = arith.constant 0 : index
    %139 = vector.load %arg2[%c1_87, %c4_88, %c0_89, %c0_90] : memref<2x9x16x32xf32, #tpu.memory_space<vmem>>, vector<1x1x16x32xf32>
    %140 = vector.shape_cast %139 : vector<1x1x16x32xf32> to vector<16x32xf32>
    %cst_91 = arith.constant dense<0.000000e+00> : vector<16x256xf32>
    %141 = tpu.matmul %140, %101, %cst_91 {dimension_numbers = #tpu.dot_dimension_numbers<[1], [0], [0], [1], [0, 0, 1, 1], [], []>} : vector<16x32xf32>, vector<32x256xf32>, vector<16x256xf32> -> vector<16x256xf32>
    %142 = arith.addf %138, %141 : vector<16x256xf32>
    %cst_92 = arith.constant 0.000000e+00 : f32
    %143 = vector.broadcast %cst_92 : f32 to vector<32x1xf32>
    %144 = vector.extract_strided_slice %105 {offsets = [0, 1], sizes = [32, 255], strides = [1, 1]} : vector<32x256xf32> to vector<32x255xf32>
    %145 = tpu.concatenate %144, %143 in 1 : vector<32x255xf32>, vector<32x1xf32> -> vector<32x256xf32>
    %c1_93 = arith.constant 1 : index
    %c5_94 = arith.constant 5 : index
    %c0_95 = arith.constant 0 : index
    %c0_96 = arith.constant 0 : index
    %146 = vector.load %arg2[%c1_93, %c5_94, %c0_95, %c0_96] : memref<2x9x16x32xf32, #tpu.memory_space<vmem>>, vector<1x1x16x32xf32>
    %147 = vector.shape_cast %146 : vector<1x1x16x32xf32> to vector<16x32xf32>
    %cst_97 = arith.constant dense<0.000000e+00> : vector<16x256xf32>
    %148 = tpu.matmul %147, %145, %cst_97 {dimension_numbers = #tpu.dot_dimension_numbers<[1], [0], [0], [1], [0, 0, 1, 1], [], []>} : vector<16x32xf32>, vector<32x256xf32>, vector<16x256xf32> -> vector<16x256xf32>
    %149 = arith.addf %142, %148 : vector<16x256xf32>
    %cst_98 = arith.constant 0.000000e+00 : f32
    %150 = vector.broadcast %cst_98 : f32 to vector<32x15xf32>
    %151 = vector.extract_strided_slice %109 {offsets = [0, 15], sizes = [32, 241], strides = [1, 1]} : vector<32x256xf32> to vector<32x241xf32>
    %152 = tpu.concatenate %151, %150 in 1 : vector<32x241xf32>, vector<32x15xf32> -> vector<32x256xf32>
    %c1_99 = arith.constant 1 : index
    %c6_100 = arith.constant 6 : index
    %c0_101 = arith.constant 0 : index
    %c0_102 = arith.constant 0 : index
    %153 = vector.load %arg2[%c1_99, %c6_100, %c0_101, %c0_102] : memref<2x9x16x32xf32, #tpu.memory_space<vmem>>, vector<1x1x16x32xf32>
    %154 = vector.shape_cast %153 : vector<1x1x16x32xf32> to vector<16x32xf32>
    %cst_103 = arith.constant dense<0.000000e+00> : vector<16x256xf32>
    %155 = tpu.matmul %154, %152, %cst_103 {dimension_numbers = #tpu.dot_dimension_numbers<[1], [0], [0], [1], [0, 0, 1, 1], [], []>} : vector<16x32xf32>, vector<32x256xf32>, vector<16x256xf32> -> vector<16x256xf32>
    %156 = arith.addf %149, %155 : vector<16x256xf32>
    %cst_104 = arith.constant 0.000000e+00 : f32
    %157 = vector.broadcast %cst_104 : f32 to vector<32x16xf32>
    %158 = vector.extract_strided_slice %101 {offsets = [0, 16], sizes = [32, 240], strides = [1, 1]} : vector<32x256xf32> to vector<32x240xf32>
    %159 = tpu.concatenate %158, %157 in 1 : vector<32x240xf32>, vector<32x16xf32> -> vector<32x256xf32>
    %c1_105 = arith.constant 1 : index
    %c7_106 = arith.constant 7 : index
    %c0_107 = arith.constant 0 : index
    %c0_108 = arith.constant 0 : index
    %160 = vector.load %arg2[%c1_105, %c7_106, %c0_107, %c0_108] : memref<2x9x16x32xf32, #tpu.memory_space<vmem>>, vector<1x1x16x32xf32>
    %161 = vector.shape_cast %160 : vector<1x1x16x32xf32> to vector<16x32xf32>
    %cst_109 = arith.constant dense<0.000000e+00> : vector<16x256xf32>
    %162 = tpu.matmul %161, %159, %cst_109 {dimension_numbers = #tpu.dot_dimension_numbers<[1], [0], [0], [1], [0, 0, 1, 1], [], []>} : vector<16x32xf32>, vector<32x256xf32>, vector<16x256xf32> -> vector<16x256xf32>
    %163 = arith.addf %156, %162 : vector<16x256xf32>
    %cst_110 = arith.constant 0.000000e+00 : f32
    %164 = vector.broadcast %cst_110 : f32 to vector<32x17xf32>
    %165 = vector.extract_strided_slice %105 {offsets = [0, 17], sizes = [32, 239], strides = [1, 1]} : vector<32x256xf32> to vector<32x239xf32>
    %166 = tpu.concatenate %165, %164 in 1 : vector<32x239xf32>, vector<32x17xf32> -> vector<32x256xf32>
    %c1_111 = arith.constant 1 : index
    %c8_112 = arith.constant 8 : index
    %c0_113 = arith.constant 0 : index
    %c0_114 = arith.constant 0 : index
    %167 = vector.load %arg2[%c1_111, %c8_112, %c0_113, %c0_114] : memref<2x9x16x32xf32, #tpu.memory_space<vmem>>, vector<1x1x16x32xf32>
    %168 = vector.shape_cast %167 : vector<1x1x16x32xf32> to vector<16x32xf32>
    %cst_115 = arith.constant dense<0.000000e+00> : vector<16x256xf32>
    %169 = tpu.matmul %168, %166, %cst_115 {dimension_numbers = #tpu.dot_dimension_numbers<[1], [0], [0], [1], [0, 0, 1, 1], [], []>} : vector<16x32xf32>, vector<32x256xf32>, vector<16x256xf32> -> vector<16x256xf32>
    %170 = arith.addf %163, %169 : vector<16x256xf32>
    %cst_116 = arith.constant 0.000000e+00 : f32
    %171 = vector.broadcast %cst_116 : f32 to vector<16x256xf32>
    %172 = arith.maximumf %170, %171 : vector<16x256xf32>
    %c1_117 = arith.constant 1 : index
    %c0_118 = arith.constant 0 : index
    %c0_119 = arith.constant 0 : index
    %173 = vector.load %arg3[%c1_117, %c0_118, %c0_119] : memref<2x32x16xf32, #tpu.memory_space<vmem>>, vector<1x32x16xf32>
    %174 = vector.shape_cast %173 : vector<1x32x16xf32> to vector<32x16xf32>
    %cst_120 = arith.constant dense<0.000000e+00> : vector<32x256xf32>
    %175 = tpu.matmul %174, %172, %cst_120 {dimension_numbers = #tpu.dot_dimension_numbers<[1], [0], [0], [1], [0, 0, 1, 1], [], []>} : vector<32x16xf32>, vector<16x256xf32>, vector<32x256xf32> -> vector<32x256xf32>
    %176 = arith.addf %99, %175 : vector<32x256xf32>
    %cst_121 = arith.constant 0.000000e+00 : f32
    %177 = vector.broadcast %cst_121 : f32 to vector<32x256xf32>
    %178 = arith.maximumf %176, %177 : vector<32x256xf32>
    %c0_122 = arith.constant 0 : index
    %c0_123 = arith.constant 0 : index
    %c0_124 = arith.constant 0 : index
    %179 = vector.load %arg4[%c0_122, %c0_123, %c0_124] : memref<1x32x256xf32, #tpu.memory_space<vmem>>, vector<1x32x256xf32>
    %180 = vector.shape_cast %179 : vector<1x32x256xf32> to vector<32x256xf32>
    %181 = vector.shape_cast %178 : vector<32x256xf32> to vector<1x32x256xf32>
    tpu.vector_store %arg4[%c0_122, %c0_123, %c0_124], %181 {strides = array<i32>} : memref<1x32x256xf32, #tpu.memory_space<vmem>>, vector<1x32x256xf32>,
    return
  }
  func.func @transform_0(%arg0: i32) -> (i32, i32, i32) {
    %c0_i32 = arith.constant 0 : i32
    %c0_i32_0 = arith.constant 0 : i32
    %c0_i32_1 = arith.constant 0 : i32
    return %arg0, %c0_i32, %c0_i32_0 : i32, i32, i32
  }
  func.func @transform_1(%arg0: i32) -> (i32, i32, i32, i32) {
    %c0_i32 = arith.constant 0 : i32
    %c0_i32_0 = arith.constant 0 : i32
    %c0_i32_1 = arith.constant 0 : i32
    %c0_i32_2 = arith.constant 0 : i32
    %c0_i32_3 = arith.constant 0 : i32
    return %c0_i32, %c0_i32_0, %c0_i32_1, %c0_i32_2 : i32, i32, i32, i32
  }
  func.func @transform_2(%arg0: i32) -> (i32, i32, i32) {
    %c0_i32 = arith.constant 0 : i32
    %c0_i32_0 = arith.constant 0 : i32
    %c0_i32_1 = arith.constant 0 : i32
    %c0_i32_2 = arith.constant 0 : i32
    return %c0_i32, %c0_i32_0, %c0_i32_1 : i32, i32, i32
  }
  func.func @transform_3(%arg0: i32) -> (i32, i32, i32) {
    %c0_i32 = arith.constant 0 : i32
    %c0_i32_0 = arith.constant 0 : i32
    %c0_i32_1 = arith.constant 0 : i32
    return %arg0, %c0_i32, %c0_i32_0 : i32, i32, i32
  }
}

</mosaic_0001>

<llo_original>
// kernel: tpu_custom_call.1
$region0: #{tpu_custom_call.1}
  #allocation0 [shape = 'u32[]', space=smem, size = 0x4, offset = 0x4, fixed_abs, tag = 'smem constant byte address 0x4 - core index']
  #allocation1 [shape = 'u32[144,128]{1,0:T(1,128)}', space=vmem, size = 0x12000, scoped, tag = 'internal scratch']
  %s0 = inlined_call_operand.hbm [shape: f32[2,32,256], index: 0, kind: input, shape index: {}]
  %s1 = inlined_call_operand.hbm [shape: f32[2,9,16,32], index: 1, kind: input, shape index: {}]
  %s2 = inlined_call_operand.vmem [shape: f32[2,32,16], index: 2, kind: input, shape index: {}]
  %s3 = inlined_call_operand.hbm [shape: f32[2,32,256], index: 3, kind: output, shape index: {}]
  %s4 = sld [smem:[#allocation0]]
  $region53: #{tpu_custom_call.1} parent=0
    _
  %s6 = ssub.s32 1, %s4
  %s7 = scalar_select 0, %s6, %s4
  $region1: #{tpu_custom_call.1} parent=0
    #allocation2 [shape = 'u8[65536]{0}', space=vmem, size = 0x10000, scoped, tag = 'input window, operand 0']
    #allocation3 [shape = 's32[2]{0}', space=sflag, size = 0x8, scoped, tag = 'scoped memory for tpu_custom_call.1']
    #allocation4 [shape = 's32[2]{0}', space=sflag, size = 0x8, scoped, tag = 'scoped memory for tpu_custom_call.1']
    #allocation5 [shape = 'u8[147456]{0}', space=vmem, size = 0x24000, scoped, tag = 'input window, operand 1, single buffered']
    #allocation6 [shape = 's32[1]{0}', space=sflag, size = 0x4, scoped, tag = 'scoped memory for tpu_custom_call.1']
    #allocation7 [shape = 'u8[65536]{0}', space=vmem, size = 0x10000, scoped, tag = 'output window, operand 0']
    %8 = vsyncpa [#allocation3], 0
    %s9 = scalar_lea.sflag [#allocation3], 1
    %10 = vsyncpa %s9, 0
    %11 = vsyncpa [#allocation6], 0
    %12 = vsyncpa [#allocation4], 0
    %s13 = scalar_lea.sflag [#allocation4], 1
    %14 = vsyncpa %s13, 0
    loop: start=0, step=1, limit=4
    $region2: #{tpu_custom_call.1} parent=1 // loop_pre_header
      _
    $region3: #{tpu_custom_call.1} parent=1 // loop_header
      %s16 = sphi 0, %s20
      %p17 = scmp.ge.s32.totalorder %s16, 4
      %s26 = sphi 0, %s28
      %s29 = sphi 0, %s26
      %s30 = sphi 0, %s29
      %s46 = sphi 0, %s30
      %s50 = sphi 0, %s50
      %s52 = sphi 0, %s50
      %s53 = sphi 0, %s52
      %s67 = sphi 0, %s53
      %s71 = sphi 0, %s71
      %s73 = sphi 0, %s71
      %s74 = sphi 0, %s73
      %s88 = sphi 0, %s74
      %s94 = sphi 0, %s96
      %s97 = sphi 0, %s94
      %s98 = sphi 0, %s97
      %s114 = sphi 0, %s98
    $region4: #{tpu_custom_call.1} parent=1 // loop_header_branch
      %19 = sbr.rel (%p17) target = $region8
    $region5: #{tpu_custom_call.1} parent=1 // loop_body
      %s21 = ssub.s32 %s16, 1
      %s22 = ssub.s32 %s16, 2
      %s23 = sadd.s32 %s16, 1
      %s24 = ssub.s32 %s16, %s23
      %p25 = scmp.eq.s32.totalorder %s24, 0
      %s27 = sadd.s32 %s26, 1
      %s28 = scalar_select %p25, %s26, %s27
      %p31 = pneg %p25
      %p32 = scmp.eq.s32.totalorder %s16, 1
      %p33 = por %p31, %p32
      %p34 = scmp.ne.s32.totalorder %s26, %s29
      %p35 = scmp.eq.s32.totalorder %s16, 0
      %p36 = por %p34, %p35
      %p37 = scmp.ne.s32.totalorder %s26, %s29
      %p38 = scmp.eq.s32.totalorder %s21, 1
      %p39 = por %p37, %p38
      %p40 = scmp.ne.s32.totalorder %s29, %s30
      %p41 = scmp.eq.s32.totalorder %s21, 0
      %p42 = por %p40, %p41
      %p43 = scmp.ne.s32.totalorder %s29, %s30
      %p44 = scmp.eq.s32.totalorder %s22, 1
      %p45 = por %p43, %p44
      %p47 = scmp.ne.s32.totalorder %s30, %s46
      %p48 = scmp.eq.s32.totalorder %s22, 0
      %p49 = por %p47, %p48
      %s51 = sadd.s32 %s50, 1
      %p54 = scmp.eq.s32.totalorder %s16, 1
      %p55 = scmp.ne.s32.totalorder %s50, %s52
      %p56 = scmp.eq.s32.totalorder %s16, 0
      %p57 = por %p55, %p56
      %p58 = scmp.ne.s32.totalorder %s50, %s52
      %p59 = scmp.eq.s32.totalorder %s21, 1
      %p60 = por %p58, %p59
      %p61 = scmp.ne.s32.totalorder %s52, %s53
      %p62 = scmp.eq.s32.totalorder %s21, 0
      %p63 = por %p61, %p62
      %p64 = scmp.ne.s32.totalorder %s52, %s53
      %p65 = scmp.eq.s32.totalorder %s22, 1
      %p66 = por %p64, %p65
      %p68 = scmp.ne.s32.totalorder %s53, %s67
      %p69 = scmp.eq.s32.totalorder %s22, 0
      %p70 = por %p68, %p69
      %s72 = sadd.s32 %s71, 1
      %p75 = scmp.eq.s32.totalorder %s16, 1
      %p76 = scmp.ne.s32.totalorder %s71, %s73
      %p77 = scmp.eq.s32.totalorder %s16, 0
      %p78 = por %p76, %p77
      %p79 = scmp.ne.s32.totalorder %s71, %s73
      %p80 = scmp.eq.s32.totalorder %s21, 1
      %p81 = por %p79, %p80
      %p82 = scmp.ne.s32.totalorder %s73, %s74
      %p83 = scmp.eq.s32.totalorder %s21, 0
      %p84 = por %p82, %p83
      %p85 = scmp.ne.s32.totalorder %s73, %s74
      %p86 = scmp.eq.s32.totalorder %s22, 1
      %p87 = por %p85, %p86
      %p89 = scmp.ne.s32.totalorder %s74, %s88
      %p90 = scmp.eq.s32.totalorder %s22, 0
      %p91 = por %p89, %p90
      %s92 = ssub.s32 %s16, %s23
      %p93 = scmp.eq.s32.totalorder %s92, 0
      %s95 = sadd.s32 %s94, 1
      %s96 = scalar_select %p93, %s94, %s95
      %p99 = pneg %p93
      %p100 = scmp.eq.s32.totalorder %s16, 1
      %p101 = por %p99, %p100
      %p102 = scmp.ne.s32.totalorder %s94, %s97
      %p103 = scmp.eq.s32.totalorder %s16, 0
      %p104 = por %p102, %p103
      %p105 = scmp.ne.s32.totalorder %s94, %s97
      %p106 = scmp.eq.s32.totalorder %s21, 1
      %p107 = por %p105, %p106
      %p108 = scmp.ne.s32.totalorder %s97, %s98
      %p109 = scmp.eq.s32.totalorder %s21, 0
      %p110 = por %p108, %p109
      %p111 = scmp.ne.s32.totalorder %s97, %s98
      %p112 = scmp.eq.s32.totalorder %s22, 1
      %p113 = por %p111, %p112
      %p115 = scmp.ne.s32.totalorder %s98, %s114
      %p116 = scmp.eq.s32.totalorder %s22, 0
      %p117 = por %p115, %p116
      %p118 = scmp.le.s32.totalorder 1, %s16
      %p119 = scmp.lt.s32.totalorder %s16, 3
      %p120 = pnand %p118, %p119
      %p121 = pneg %p120
      // Predicated region
      $region9: #{tpu_custom_call.1} parent=5 // pred_check
        _
      $region10: #{tpu_custom_call.1} parent=5 // pred_check_branch
        %123 = sbr.rel (%p120) target = $region12
      $region11: #{tpu_custom_call.1} parent=5 // pred_region
        %s124 = ssub.s32 %s16, 1
        // Predicated region
        $region13: #{tpu_custom_call.1} parent=11 // pred_check
          %p125 = pneg %p63
        $region14: #{tpu_custom_call.1} parent=11 // pred_check_branch
          %127 = sbr.rel (%p125) target = $region16
        $region15: #{tpu_custom_call.1} parent=11 // pred_region
          %s129 = ssub.s32 4608, 4608
          %130 = vsyncadd [#allocation6], %s129
          %s131 = sshll.u32 [#allocation5], 4
          %s132 = int_to_ptr.vmem [resolvable:$true] %s131
          %137 = dma.hbm_to_vmem [thread:$0]  %s1, 4608, %s132, [#allocation6], 128, 128, 8
        $region16: #{tpu_custom_call.1} parent=11 // pred_fallthru
          _
        // Predicated region
        $region17: #{tpu_custom_call.1} parent=11 // pred_check
          %p138 = pneg %p84
        $region18: #{tpu_custom_call.1} parent=11 // pred_check_branch
          %140 = sbr.rel (%p138) target = $region20
        $region19: #{tpu_custom_call.1} parent=11 // pred_region
          _
        $region20: #{tpu_custom_call.1} parent=11 // pred_fallthru
          _
      $region12: #{tpu_custom_call.1} parent=5 // pred_fallthru
        _
      %p141 = scmp.lt.s32.totalorder %s16, 2
      // Predicated region
      $region21: #{tpu_custom_call.1} parent=5 // pred_check
        %p142 = pneg %p141
      $region22: #{tpu_custom_call.1} parent=5 // pred_check_branch
        %144 = sbr.rel (%p142) target = $region24
      $region23: #{tpu_custom_call.1} parent=5 // pred_region
        // Predicated region
        $region25: #{tpu_custom_call.1} parent=23 // pred_check
          %p145 = pneg %p36
        $region26: #{tpu_custom_call.1} parent=23 // pred_check_branch
          %147 = sbr.rel (%p145) target = $region28
        $region27: #{tpu_custom_call.1} parent=23 // pred_region
          %s148 = sand.u32 %s26, 1
          %s149 = scalar_lea.sflag [#allocation3], %s148
          %s150 = sand.u32 %s26, 1
          %s151 = smul.addr %s150, 64
          %s152 = scalar_lea.vmem [#allocation2], %s151
          %s154 = ssub.s32 1024, 1024
          %155 = vsyncadd %s149, %s154
          %s156 = smul.addr %s16, 8
          %s157 = smul.addr %s156, 128
          %s158 = scalar_lea.hbm %s0, %s157
          %s159 = sshll.u32 %s152, 4
          %s160 = int_to_ptr.vmem [resolvable:$true] %s159
          %165 = dma.hbm_to_vmem [thread:$0]  %s158, 1024, %s160, %s149, 256, 256, 16
        $region28: #{tpu_custom_call.1} parent=23 // pred_fallthru
          _
      $region24: #{tpu_custom_call.1} parent=5 // pred_fallthru
        _
      %p166 = scmp.le.s32.totalorder 1, %s16
      %p167 = scmp.lt.s32.totalorder %s16, 3
      %p168 = pnand %p166, %p167
      %p169 = pneg %p168
      // Predicated region
      $region29: #{tpu_custom_call.1} parent=5 // pred_check
        _
      $region30: #{tpu_custom_call.1} parent=5 // pred_check_branch
        %171 = sbr.rel (%p168) target = $region32
      $region31: #{tpu_custom_call.1} parent=5 // pred_region
        %s172 = ssub.s32 %s16, 1
        %s173 = sand.u32 %s29, 1
        %s174 = scalar_lea.sflag [#allocation3], %s173
        %s175 = sand.u32 %s29, 1
        %s176 = smul.addr %s175, 64
        %s177 = scalar_lea.vmem [#allocation2], %s176
        // Predicated region
        $region33: #{tpu_custom_call.1} parent=31 // pred_check
          %p178 = pneg %p42
        $region34: #{tpu_custom_call.1} parent=31 // pred_check_branch
          %180 = sbr.rel (%p178) target = $region36
        $region35: #{tpu_custom_call.1} parent=31 // pred_region
          %181 = dma.done %s174, 1024
        $region36: #{tpu_custom_call.1} parent=31 // pred_fallthru
          _
        // Predicated region
        $region37: #{tpu_custom_call.1} parent=31 // pred_check
          %p182 = pneg %p63
        $region38: #{tpu_custom_call.1} parent=31 // pred_check_branch
          %184 = sbr.rel (%p182) target = $region40
        $region39: #{tpu_custom_call.1} parent=31 // pred_region
          %185 = dma.done [#allocation6], 4608
        $region40: #{tpu_custom_call.1} parent=31 // pred_fallthru
          _
        %s186 = sand.u32 %s29, 1
        %s187 = scalar_lea.sflag [#allocation3], %s186
        %s188 = sand.u32 %s29, 1
        %s189 = smul.addr %s188, 64
        %s190 = scalar_lea.vmem [#allocation2], %s189
        %p191 = pneg %p42
        %p192 = pneg %p39
        %p193 = pneg %p63
        %p194 = pneg %p60
        %p195 = pneg %p84
        %p196 = pneg %p81
        %p197 = pneg %p110
        %p198 = pneg %p107
        %s199 = sand.u32 %s97, 1
        %s200 = scalar_lea.sflag [#allocation4], %s199
        %s201 = sand.u32 %s97, 1
        %s202 = smul.addr %s201, 64
        %s203 = scalar_lea.vmem [#allocation7], %s202
        %v204 = vlaneseq
        %v205 = vand.u32 %v204, 127
        %v206 = vadd.s32 %v205, 128
        %vm207 = vcmp.lt.s32.totalorder %v205, 0
        %v208 = vsub.s32 0, %v205
        %v209 = vsel %vm207, %v208, %v205
        %v210 = vshrl.u32 %v209, 4
        %v211 = vand.u32 %v209, 15
        %v212 = vsub.s32 0, %v211
        %v213 = vsel %vm207, %v212, %v211
        %vm214 = vcmp.lt.s32.totalorder %v206, 0
        %v215 = vsub.s32 0, %v206
        %v216 = vsel %vm214, %v215, %v206
        %v217 = vshrl.u32 %v216, 4
        %v218 = vand.u32 %v216, 15
        %v219 = vsub.s32 0, %v218
        %v220 = vsel %vm214, %v219, %v218
        %vm221 = vcmp.ne.s32.totalorder %v213, 0
        %vm222 = vcmp.ne.s32.totalorder %v220, 0
        %vm223 = vcmp.lt.s32.totalorder %v213, 0
        %vm224 = vcmp.lt.s32.totalorder %v220, 0
        %vm225 = vmand %vm223, %vm221
        %vm226 = vmand %vm224, %vm222
        %v227 = vadd.s32 %v213, 16
        %v228 = vadd.s32 %v220, 16
        %v229 = vsel %vm225, %v227, %v213
        %v230 = vsel %vm226, %v228, %v220
        %vm231 = vcmp.ne.s32.totalorder %v229, 0
        %vm232 = vcmp.ne.s32.totalorder %v230, 0
        %vm233 = vcmp.ne.s32.totalorder %v229, 15
        %vm234 = vcmp.ne.s32.totalorder %v230, 15
        %v235 = vld [vmem:[%s177] sm:$0xff]
        %v236 = vld [vmem:[%s177 + $0x8] sm:$0xff]
        %v237 = vld [vmem:[%s177 + $0x10] sm:$0xff]
        %v238 = vld [vmem:[%s177 + $0x18] sm:$0xff]
        %v239 = vld [vmem:[%s177 + $0x20] sm:$0xff]
        %v240 = vld [vmem:[%s177 + $0x28] sm:$0xff]
        %v241 = vld [vmem:[%s177 + $0x30] sm:$0xff]
        %v242 = vld [vmem:[%s177 + $0x38] sm:$0xff]
        %v243 = vmax.f32 %v235, 0.0
        %v244 = vmax.f32 %v236, 0.0
        %v245 = vmax.f32 %v237, 0.0
        %v246 = vmax.f32 %v238, 0.0
        %v247 = vmax.f32 %v239, 0.0
        %v248 = vmax.f32 %v240, 0.0
        %v249 = vmax.f32 %v241, 0.0
        %v250 = vmax.f32 %v242, 0.0
        %v251 = vsel %vm231, 1, 0
        %v252 = vsel %vm232, 1, 0
        %vm253 = vcmp.eq.s32.totalorder %v251, 1
        %vm254 = vcmp.eq.s32.totalorder %v252, 1
        %v255 = vsel %vm253, %v243, 0.0
        %v256 = vsel %vm254, %v244, 0.0
        %v257 = vsel %vm253, %v245, 0.0
        %v258 = vsel %vm254, %v246, 0.0
        %v259 = vsel %vm253, %v247, 0.0
        %v260 = vsel %vm254, %v248, 0.0
        %v261 = vsel %vm253, %v249, 0.0
        %v262 = vsel %vm254, %v250, 0.0
        %v263 = vsel %vm233, 1, 0
        %v264 = vsel %vm234, 1, 0
        %vm265 = vcmp.eq.s32.totalorder %v263, 1
        %vm266 = vcmp.eq.s32.totalorder %v264, 1
        %v267 = vsel %vm265, %v243, 0.0
        %v268 = vsel %vm266, %v244, 0.0
        %v269 = vsel %vm265, %v245, 0.0
        %v270 = vsel %vm266, %v246, 0.0
        %v271 = vsel %vm265, %v247, 0.0
        %v272 = vsel %vm266, %v248, 0.0
        %v273 = vsel %vm265, %v249, 0.0
        %v274 = vsel %vm266, %v250, 0.0
        %283 = vrot.lane.b32.xlu0 %v267, 17
        %v284 = vpop.permute.xlu0 %283
        %285 = vrot.lane.b32.xlu0 %v268, 17
        %v286 = vpop.permute.xlu0 %285
        %287 = vrot.lane.b32.xlu0 %v269, 17
        %v288 = vpop.permute.xlu0 %287
        %289 = vrot.lane.b32.xlu0 %v270, 17
        %v290 = vpop.permute.xlu0 %289
        %291 = vrot.lane.b32.xlu0 %v271, 17
        %v292 = vpop.permute.xlu0 %291
        %293 = vrot.lane.b32.xlu0 %v272, 17
        %v294 = vpop.permute.xlu0 %293
        %295 = vrot.lane.b32.xlu0 %v273, 17
        %v296 = vpop.permute.xlu0 %295
        %297 = vrot.lane.b32.xlu0 %v274, 17
        %v298 = vpop.permute.xlu0 %297
        %vm299 = vcmask 138240
        %v300 = vsel %vm299, %v284, %v286
        %v301 = vsel %vm299, %v288, %v290
        %v302 = vsel %vm299, %v292, %v294
        %v303 = vsel %vm299, %v296, %v298
        %v312 = vsel %vm299, 0.0, %v284
        %v313 = vsel %vm299, 0.0, %v288
        %v314 = vsel %vm299, 0.0, %v292
        %v315 = vsel %vm299, 0.0, %v296
        %v316 = vld [vmem:[#allocation5] sm:$0xff]
        %v317 = vld [vmem:[#allocation5 + $0x8] sm:$0xff]
        %326 = vrot.lane.b32.xlu0 %v243, 16
        %v327 = vpop.permute.xlu0 %326
        %328 = vrot.lane.b32.xlu0 %v244, 16
        %v329 = vpop.permute.xlu0 %328
        %330 = vrot.lane.b32.xlu0 %v245, 16
        %v331 = vpop.permute.xlu0 %330
        %332 = vrot.lane.b32.xlu0 %v246, 16
        %v333 = vpop.permute.xlu0 %332
        %334 = vrot.lane.b32.xlu0 %v247, 16
        %v335 = vpop.permute.xlu0 %334
        %336 = vrot.lane.b32.xlu0 %v248, 16
        %v337 = vpop.permute.xlu0 %336
        %338 = vrot.lane.b32.xlu0 %v249, 16
        %v339 = vpop.permute.xlu0 %338
        %340 = vrot.lane.b32.xlu0 %v250, 16
        %v341 = vpop.permute.xlu0 %340
        %vm342 = vcmask 130048
        %v343 = vsel %vm342, %v327, %v329
        %v344 = vsel %vm342, %v331, %v333
        %v345 = vsel %vm342, %v335, %v337
        %v346 = vsel %vm342, %v339, %v341
        %v355 = vsel %vm342, 0.0, %v327
        %v356 = vsel %vm342, 0.0, %v331
        %v357 = vsel %vm342, 0.0, %v335
        %v358 = vsel %vm342, 0.0, %v339
        %s359 = scalar_lea.vmem [#allocation5], 16
        %v360 = vld [vmem:[%s359] sm:$0xff]
        %v361 = vld [vmem:[%s359 + $0x8] sm:$0xff]
        %vm362 = vcmask 261120
        %v364 = vsel %vm362, %v360, 0
        %v367 = vsel %vm362, %v361, 0
        %369 = vmatprep.subr.mxu0 %v343
        %370 = vmatpush1.msra.mxu0 %v355
        %371 = vmatprep.subr.mxu0 %v344
        %372 = vmatpush1.msra.mxu0 %v356
        %373 = vmatprep.subr.mxu0 %v345
        %374 = vmatpush1.msra.mxu0 %v357
        %375 = vmatprep.subr.mxu0 %v346
        %376 = vmatpush1.msra.mxu0 %v358
        %377 = vmatprep.subr.mxu0 0.0
        %378 = vmatpush1.msra.mxu0 0.0
        %379 = vmatprep.subr.mxu0 0.0
        %380 = vmatpush1.msra.mxu0 0.0
        %381 = vmatprep.subr.mxu0 0.0
        %382 = vmatpush1.msra.mxu0 0.0
        %383 = vmatprep.subr.mxu0 0.0
        %384 = vmatpush1.msra.mxu0 0.0
        %385 = vmatprep.subr.mxu0 0.0
        %386 = vmatpush1.msra.mxu0 0.0
        %387 = vmatprep.subr.mxu0 0.0
        %388 = vmatpush1.msra.mxu0 0.0
        %389 = vmatprep.subr.mxu0 0.0
        %390 = vmatpush1.msra.mxu0 0.0
        %391 = vmatprep.subr.mxu0 0.0
        %392 = vmatpush1.msra.mxu0 0.0
        %393 = vmatprep.subr.mxu0 0.0
        %394 = vmatpush1.msra.mxu0 0.0
        %395 = vmatprep.subr.mxu0 0.0
        %396 = vmatpush1.msra.mxu0 0.0
        %397 = vmatprep.subr.mxu0 0.0
        %398 = vmatpush1.msra.mxu0 0.0
        %399 = vmatprep.subr.mxu0 0.0
        %400 = vmatpush1.msra.mxu0 0.0
        %401 = vmatprep.subr.mxu0 0.0
        %402 = vmatpush1.msra.mxu0 0.0
        %403 = vmatprep.subr.mxu0 0.0
        %404 = vmatpush1.msra.mxu0 0.0
        %405 = vmatprep.subr.mxu0 0.0
        %406 = vmatpush1.msra.mxu0 0.0
        %407 = vmatprep.subr.mxu0 0.0
        %408 = vmatpush1.msra.mxu0 0.0
        %409 = vmatprep.subr.mxu0 0.0
        %410 = vmatpush1.msra.mxu0 0.0
        %411 = vmatprep.subr.mxu0 0.0
        %412 = vmatpush1.msra.mxu0 0.0
        %413 = vmatprep.subr.mxu0 0.0
        %414 = vmatpush1.msra.mxu0 0.0
        %415 = vmatprep.subr.mxu0 0.0
        %416 = vmatpush1.msra.mxu0 0.0
        %417 = vmatprep.subr.mxu0 0.0
        %418 = vmatpush1.msra.mxu0 0.0
        %419 = vmatprep.subr.mxu0 0.0
        %420 = vmatpush1.msra.mxu0 0.0
        %421 = vmatprep.subr.mxu0 0.0
        %422 = vmatpush1.msra.mxu0 0.0
        %423 = vmatprep.subr.mxu0 0.0
        %424 = vmatpush1.msra.mxu0 0.0
        %425 = vmatprep.subr.mxu0 0.0
        %426 = vmatpush1.msra.mxu0 0.0
        %427 = vmatprep.subr.mxu0 0.0
        %428 = vmatpush1.msra.mxu0 0.0
        %429 = vmatprep.subr.mxu0 0.0
        %430 = vmatpush1.msra.mxu0 0.0
        %431 = vmatprep.subr.mxu0 0.0
        %432 = vmatpush1.msra.mxu0 0.0
        %433 = vmatprep.mubr.f32.mxu0 0.0
        %434 = vmatmul.mubr.f32.gmra.mrb[0].mxu0 %v364
        %v435 = vpop.f32.mrb[0].mxu0
        %v436 = vadd.f32 0.0, %v435
        %v437 = vpop.f32.mrb[0].mxu0
        %v438 = vadd.f32 0.0, %v437
        %439 = vmatprep.mubr.f32.mxu0 0.0
        %440 = vmatmul.mubr.f32.gmra.mrb[0].mxu0 %v367
        %v441 = vpop.f32.mrb[0].mxu0
        %v442 = vadd.f32 0.0, %v441
        %v443 = vpop.f32.mrb[0].mxu0
        %v444 = vadd.f32 0.0, %v443
        %445 = vdwg.mxu0
        %v447 = vsel %vm362, %v316, 0
        %v450 = vsel %vm362, %v317, 0
        %452 = vmatprep.subr.mxu0 %v300
        %453 = vmatpush1.msra.mxu0 %v312
        %454 = vmatprep.subr.mxu0 %v301
        %455 = vmatpush1.msra.mxu0 %v313
        %456 = vmatprep.subr.mxu0 %v302
        %457 = vmatpush1.msra.mxu0 %v314
        %458 = vmatprep.subr.mxu0 %v303
        %459 = vmatpush1.msra.mxu0 %v315
        %460 = vmatprep.subr.mxu0 0.0
        %461 = vmatpush1.msra.mxu0 0.0
        %462 = vmatprep.subr.mxu0 0.0
        %463 = vmatpush1.msra.mxu0 0.0
        %464 = vmatprep.subr.mxu0 0.0
        %465 = vmatpush1.msra.mxu0 0.0
        %466 = vmatprep.subr.mxu0 0.0
        %467 = vmatpush1.msra.mxu0 0.0
        %468 = vmatprep.subr.mxu0 0.0
        %469 = vmatpush1.msra.mxu0 0.0
        %470 = vmatprep.subr.mxu0 0.0
        %471 = vmatpush1.msra.mxu0 0.0
        %472 = vmatprep.subr.mxu0 0.0
        %473 = vmatpush1.msra.mxu0 0.0
        %474 = vmatprep.subr.mxu0 0.0
        %475 = vmatpush1.msra.mxu0 0.0
        %476 = vmatprep.subr.mxu0 0.0
        %477 = vmatpush1.msra.mxu0 0.0
        %478 = vmatprep.subr.mxu0 0.0
        %479 = vmatpush1.msra.mxu0 0.0
        %480 = vmatprep.subr.mxu0 0.0
        %481 = vmatpush1.msra.mxu0 0.0
        %482 = vmatprep.subr.mxu0 0.0
        %483 = vmatpush1.msra.mxu0 0.0
        %484 = vmatprep.subr.mxu0 0.0
        %485 = vmatpush1.msra.mxu0 0.0
        %486 = vmatprep.subr.mxu0 0.0
        %487 = vmatpush1.msra.mxu0 0.0
        %488 = vmatprep.subr.mxu0 0.0
        %489 = vmatpush1.msra.mxu0 0.0
        %490 = vmatprep.subr.mxu0 0.0
        %491 = vmatpush1.msra.mxu0 0.0
        %492 = vmatprep.subr.mxu0 0.0
        %493 = vmatpush1.msra.mxu0 0.0
        %494 = vmatprep.subr.mxu0 0.0
        %495 = vmatpush1.msra.mxu0 0.0
        %496 = vmatprep.subr.mxu0 0.0
        %497 = vmatpush1.msra.mxu0 0.0
        %498 = vmatprep.subr.mxu0 0.0
        %499 = vmatpush1.msra.mxu0 0.0
        %500 = vmatprep.subr.mxu0 0.0
        %501 = vmatpush1.msra.mxu0 0.0
        %502 = vmatprep.subr.mxu0 0.0
        %503 = vmatpush1.msra.mxu0 0.0
        %504 = vmatprep.subr.mxu0 0.0
        %505 = vmatpush1.msra.mxu0 0.0
        %506 = vmatprep.subr.mxu0 0.0
        %507 = vmatpush1.msra.mxu0 0.0
        %508 = vmatprep.subr.mxu0 0.0
        %509 = vmatpush1.msra.mxu0 0.0
        %510 = vmatprep.subr.mxu0 0.0
        %511 = vmatpush1.msra.mxu0 0.0
        %512 = vmatprep.subr.mxu0 0.0
        %513 = vmatpush1.msra.mxu0 0.0
        %514 = vmatprep.subr.mxu0 0.0
        %515 = vmatpush1.msra.mxu0 0.0
        %516 = vmatprep.mubr.f32.mxu0 0.0
        %517 = vmatmul.mubr.f32.gmra.mrb[0].mxu0 %v447
        %v518 = vpop.f32.mrb[0].mxu0
        %v519 = vadd.f32 %v436, %v518
        %v520 = vpop.f32.mrb[0].mxu0
        %v521 = vadd.f32 %v438, %v520
        %522 = vmatprep.mubr.f32.mxu0 0.0
        %523 = vmatmul.mubr.f32.gmra.mrb[0].mxu0 %v450
        %v524 = vpop.f32.mrb[0].mxu0
        %v525 = vadd.f32 %v442, %v524
        %v526 = vpop.f32.mrb[0].mxu0
        %v527 = vadd.f32 %v444, %v526
        %528 = vdwg.mxu0
        %537 = vrot.lane.b32.xlu0 %v255, 15
        %v538 = vpop.permute.xlu0 %537
        %539 = vrot.lane.b32.xlu0 %v256, 15
        %v540 = vpop.permute.xlu0 %539
        %541 = vrot.lane.b32.xlu0 %v257, 15
        %v542 = vpop.permute.xlu0 %541
        %543 = vrot.lane.b32.xlu0 %v258, 15
        %v544 = vpop.permute.xlu0 %543
        %545 = vrot.lane.b32.xlu0 %v259, 15
        %v546 = vpop.permute.xlu0 %545
        %547 = vrot.lane.b32.xlu0 %v260, 15
        %v548 = vpop.permute.xlu0 %547
        %549 = vrot.lane.b32.xlu0 %v261, 15
        %v550 = vpop.permute.xlu0 %549
        %551 = vrot.lane.b32.xlu0 %v262, 15
        %v552 = vpop.permute.xlu0 %551
        %vm553 = vcmask 121856
        %v554 = vsel %vm553, %v538, %v540
        %v555 = vsel %vm553, %v542, %v544
        %v556 = vsel %vm553, %v546, %v548
        %v557 = vsel %vm553, %v550, %v552
        %v566 = vsel %vm553, 0.0, %v538
        %v567 = vsel %vm553, 0.0, %v542
        %v568 = vsel %vm553, 0.0, %v546
        %v569 = vsel %vm553, 0.0, %v550
        %s570 = scalar_lea.vmem [#allocation5], 32
        %v571 = vld [vmem:[%s570] sm:$0xff]
        %v572 = vld [vmem:[%s570 + $0x8] sm:$0xff]
        %v574 = vsel %vm362, %v571, 0
        %v577 = vsel %vm362, %v572, 0
        %579 = vmatprep.subr.mxu0 %v554
        %580 = vmatpush1.msra.mxu0 %v566
        %581 = vmatprep.subr.mxu0 %v555
        %582 = vmatpush1.msra.mxu0 %v567
        %583 = vmatprep.subr.mxu0 %v556
        %584 = vmatpush1.msra.mxu0 %v568
        %585 = vmatprep.subr.mxu0 %v557
        %586 = vmatpush1.msra.mxu0 %v569
        %587 = vmatprep.subr.mxu0 0.0
        %588 = vmatpush1.msra.mxu0 0.0
        %589 = vmatprep.subr.mxu0 0.0
        %590 = vmatpush1.msra.mxu0 0.0
        %591 = vmatprep.subr.mxu0 0.0
        %592 = vmatpush1.msra.mxu0 0.0
        %593 = vmatprep.subr.mxu0 0.0
        %594 = vmatpush1.msra.mxu0 0.0
        %595 = vmatprep.subr.mxu0 0.0
        %596 = vmatpush1.msra.mxu0 0.0
        %597 = vmatprep.subr.mxu0 0.0
        %598 = vmatpush1.msra.mxu0 0.0
        %599 = vmatprep.subr.mxu0 0.0
        %600 = vmatpush1.msra.mxu0 0.0
        %601 = vmatprep.subr.mxu0 0.0
        %602 = vmatpush1.msra.mxu0 0.0
        %603 = vmatprep.subr.mxu0 0.0
        %604 = vmatpush1.msra.mxu0 0.0
        %605 = vmatprep.subr.mxu0 0.0
        %606 = vmatpush1.msra.mxu0 0.0
        %607 = vmatprep.subr.mxu0 0.0
        %608 = vmatpush1.msra.mxu0 0.0
        %609 = vmatprep.subr.mxu0 0.0
        %610 = vmatpush1.msra.mxu0 0.0
        %611 = vmatprep.subr.mxu0 0.0
        %612 = vmatpush1.msra.mxu0 0.0
        %613 = vmatprep.subr.mxu0 0.0
        %614 = vmatpush1.msra.mxu0 0.0
        %615 = vmatprep.subr.mxu0 0.0
        %616 = vmatpush1.msra.mxu0 0.0
        %617 = vmatprep.subr.mxu0 0.0
        %618 = vmatpush1.msra.mxu0 0.0
        %619 = vmatprep.subr.mxu0 0.0
        %620 = vmatpush1.msra.mxu0 0.0
        %621 = vmatprep.subr.mxu0 0.0
        %622 = vmatpush1.msra.mxu0 0.0
        %623 = vmatprep.subr.mxu0 0.0
        %624 = vmatpush1.msra.mxu0 0.0
        %625 = vmatprep.subr.mxu0 0.0
        %626 = vmatpush1.msra.mxu0 0.0
        %627 = vmatprep.subr.mxu0 0.0
        %628 = vmatpush1.msra.mxu0 0.0
        %629 = vmatprep.subr.mxu0 0.0
        %630 = vmatpush1.msra.mxu0 0.0
        %631 = vmatprep.subr.mxu0 0.0
        %632 = vmatpush1.msra.mxu0 0.0
        %633 = vmatprep.subr.mxu0 0.0
        %634 = vmatpush1.msra.mxu0 0.0
        %635 = vmatprep.subr.mxu0 0.0
        %636 = vmatpush1.msra.mxu0 0.0
        %637 = vmatprep.subr.mxu0 0.0
        %638 = vmatpush1.msra.mxu0 0.0
        %639 = vmatprep.subr.mxu0 0.0
        %640 = vmatpush1.msra.mxu0 0.0
        %641 = vmatprep.subr.mxu0 0.0
        %642 = vmatpush1.msra.mxu0 0.0
        %643 = vmatprep.mubr.f32.mxu0 0.0
        %644 = vmatmul.mubr.f32.gmra.mrb[0].mxu0 %v574
        %v645 = vpop.f32.mrb[0].mxu0
        %v646 = vadd.f32 0.0, %v645
        %v647 = vpop.f32.mrb[0].mxu0
        %v648 = vadd.f32 0.0, %v647
        %649 = vmatprep.mubr.f32.mxu0 0.0
        %650 = vmatmul.mubr.f32.gmra.mrb[0].mxu0 %v577
        %v651 = vpop.f32.mrb[0].mxu0
        %v652 = vadd.f32 0.0, %v651
        %v653 = vpop.f32.mrb[0].mxu0
        %v654 = vadd.f32 0.0, %v653
        %655 = vdwg.mxu0
        %v656 = vadd.f32 %v519, %v646
        %v657 = vadd.f32 %v521, %v648
        %v658 = vadd.f32 %v525, %v652
        %v659 = vadd.f32 %v527, %v654
        %660 = vrot.lane.b32.xlu0 %v267, 1
        %v661 = vpop.permute.xlu0 %660
        %662 = vrot.lane.b32.xlu0 %v268, 1
        %v663 = vpop.permute.xlu0 %662
        %664 = vrot.lane.b32.xlu0 %v269, 1
        %v665 = vpop.permute.xlu0 %664
        %666 = vrot.lane.b32.xlu0 %v270, 1
        %v667 = vpop.permute.xlu0 %666
        %668 = vrot.lane.b32.xlu0 %v271, 1
        %v669 = vpop.permute.xlu0 %668
        %670 = vrot.lane.b32.xlu0 %v272, 1
        %v671 = vpop.permute.xlu0 %670
        %672 = vrot.lane.b32.xlu0 %v273, 1
        %v673 = vpop.permute.xlu0 %672
        %674 = vrot.lane.b32.xlu0 %v274, 1
        %v675 = vpop.permute.xlu0 %674
        %vm676 = vcmask 7168
        %v677 = vsel %vm676, %v661, %v663
        %v678 = vsel %vm676, %v665, %v667
        %v679 = vsel %vm676, %v669, %v671
        %v680 = vsel %vm676, %v673, %v675
        %v689 = vsel %vm676, 0.0, %v661
        %v690 = vsel %vm676, 0.0, %v665
        %v691 = vsel %vm676, 0.0, %v669
        %v692 = vsel %vm676, 0.0, %v673
        %s693 = scalar_lea.vmem [#allocation5], 48
        %v694 = vld [vmem:[%s693] sm:$0xff]
        %v695 = vld [vmem:[%s693 + $0x8] sm:$0xff]
        %v697 = vsel %vm362, %v694, 0
        %v700 = vsel %vm362, %v695, 0
        %702 = vmatprep.subr.mxu0 %v677
        %703 = vmatpush1.msra.mxu0 %v689
        %704 = vmatprep.subr.mxu0 %v678
        %705 = vmatpush1.msra.mxu0 %v690
        %706 = vmatprep.subr.mxu0 %v679
        %707 = vmatpush1.msra.mxu0 %v691
        %708 = vmatprep.subr.mxu0 %v680
        %709 = vmatpush1.msra.mxu0 %v692
        %710 = vmatprep.subr.mxu0 0.0
        %711 = vmatpush1.msra.mxu0 0.0
        %712 = vmatprep.subr.mxu0 0.0
        %713 = vmatpush1.msra.mxu0 0.0
        %714 = vmatprep.subr.mxu0 0.0
        %715 = vmatpush1.msra.mxu0 0.0
        %716 = vmatprep.subr.mxu0 0.0
        %717 = vmatpush1.msra.mxu0 0.0
        %718 = vmatprep.subr.mxu0 0.0
        %719 = vmatpush1.msra.mxu0 0.0
        %720 = vmatprep.subr.mxu0 0.0
        %721 = vmatpush1.msra.mxu0 0.0
        %722 = vmatprep.subr.mxu0 0.0
        %723 = vmatpush1.msra.mxu0 0.0
        %724 = vmatprep.subr.mxu0 0.0
        %725 = vmatpush1.msra.mxu0 0.0
        %726 = vmatprep.subr.mxu0 0.0
        %727 = vmatpush1.msra.mxu0 0.0
        %728 = vmatprep.subr.mxu0 0.0
        %729 = vmatpush1.msra.mxu0 0.0
        %730 = vmatprep.subr.mxu0 0.0
        %731 = vmatpush1.msra.mxu0 0.0
        %732 = vmatprep.subr.mxu0 0.0
        %733 = vmatpush1.msra.mxu0 0.0
        %734 = vmatprep.subr.mxu0 0.0
        %735 = vmatpush1.msra.mxu0 0.0
        %736 = vmatprep.subr.mxu0 0.0
        %737 = vmatpush1.msra.mxu0 0.0
        %738 = vmatprep.subr.mxu0 0.0
        %739 = vmatpush1.msra.mxu0 0.0
        %740 = vmatprep.subr.mxu0 0.0
        %741 = vmatpush1.msra.mxu0 0.0
        %742 = vmatprep.subr.mxu0 0.0
        %743 = vmatpush1.msra.mxu0 0.0
        %744 = vmatprep.subr.mxu0 0.0
        %745 = vmatpush1.msra.mxu0 0.0
        %746 = vmatprep.subr.mxu0 0.0
        %747 = vmatpush1.msra.mxu0 0.0
        %748 = vmatprep.subr.mxu0 0.0
        %749 = vmatpush1.msra.mxu0 0.0
        %750 = vmatprep.subr.mxu0 0.0
        %751 = vmatpush1.msra.mxu0 0.0
        %752 = vmatprep.subr.mxu0 0.0
        %753 = vmatpush1.msra.mxu0 0.0
        %754 = vmatprep.subr.mxu0 0.0
        %755 = vmatpush1.msra.mxu0 0.0
        %756 = vmatprep.subr.mxu0 0.0
        %757 = vmatpush1.msra.mxu0 0.0
        %758 = vmatprep.subr.mxu0 0.0
        %759 = vmatpush1.msra.mxu0 0.0
        %760 = vmatprep.subr.mxu0 0.0
        %761 = vmatpush1.msra.mxu0 0.0
        %762 = vmatprep.subr.mxu0 0.0
        %763 = vmatpush1.msra.mxu0 0.0
        %764 = vmatprep.subr.mxu0 0.0
        %765 = vmatpush1.msra.mxu0 0.0
        %766 = vmatprep.mubr.f32.mxu0 0.0
        %767 = vmatmul.mubr.f32.gmra.mrb[0].mxu0 %v697
        %v768 = vpop.f32.mrb[0].mxu0
        %v769 = vadd.f32 0.0, %v768
        %v770 = vpop.f32.mrb[0].mxu0
        %v771 = vadd.f32 0.0, %v770
        %772 = vmatprep.mubr.f32.mxu0 0.0
        %773 = vmatmul.mubr.f32.gmra.mrb[0].mxu0 %v700
        %v774 = vpop.f32.mrb[0].mxu0
        %v775 = vadd.f32 0.0, %v774
        %v776 = vpop.f32.mrb[0].mxu0
        %v777 = vadd.f32 0.0, %v776
        %778 = vdwg.mxu0
        %v779 = vadd.f32 %v656, %v769
        %v780 = vadd.f32 %v657, %v771
        %v781 = vadd.f32 %v658, %v775
        %v782 = vadd.f32 %v659, %v777
        %s783 = scalar_lea.vmem [#allocation5], 64
        %v784 = vld [vmem:[%s783] sm:$0xff]
        %v785 = vld [vmem:[%s783 + $0x8] sm:$0xff]
        %v787 = vsel %vm362, %v784, 0
        %v790 = vsel %vm362, %v785, 0
        %792 = vmatprep.subr.mxu0 %v244
        %793 = vmatpush1.msra.mxu0 %v243
        %794 = vmatprep.subr.mxu0 %v246
        %795 = vmatpush1.msra.mxu0 %v245
        %796 = vmatprep.subr.mxu0 %v248
        %797 = vmatpush1.msra.mxu0 %v247
        %798 = vmatprep.subr.mxu0 %v250
        %799 = vmatpush1.msra.mxu0 %v249
        %800 = vmatprep.subr.mxu0 0.0
        %801 = vmatpush1.msra.mxu0 0.0
        %802 = vmatprep.subr.mxu0 0.0
        %803 = vmatpush1.msra.mxu0 0.0
        %804 = vmatprep.subr.mxu0 0.0
        %805 = vmatpush1.msra.mxu0 0.0
        %806 = vmatprep.subr.mxu0 0.0
        %807 = vmatpush1.msra.mxu0 0.0
        %808 = vmatprep.subr.mxu0 0.0
        %809 = vmatpush1.msra.mxu0 0.0
        %810 = vmatprep.subr.mxu0 0.0
        %811 = vmatpush1.msra.mxu0 0.0
        %812 = vmatprep.subr.mxu0 0.0
        %813 = vmatpush1.msra.mxu0 0.0
        %814 = vmatprep.subr.mxu0 0.0
        %815 = vmatpush1.msra.mxu0 0.0
        %816 = vmatprep.subr.mxu0 0.0
        %817 = vmatpush1.msra.mxu0 0.0
        %818 = vmatprep.subr.mxu0 0.0
        %819 = vmatpush1.msra.mxu0 0.0
        %820 = vmatprep.subr.mxu0 0.0
        %821 = vmatpush1.msra.mxu0 0.0
        %822 = vmatprep.subr.mxu0 0.0
        %823 = vmatpush1.msra.mxu0 0.0
        %824 = vmatprep.subr.mxu0 0.0
        %825 = vmatpush1.msra.mxu0 0.0
        %826 = vmatprep.subr.mxu0 0.0
        %827 = vmatpush1.msra.mxu0 0.0
        %828 = vmatprep.subr.mxu0 0.0
        %829 = vmatpush1.msra.mxu0 0.0
        %830 = vmatprep.subr.mxu0 0.0
        %831 = vmatpush1.msra.mxu0 0.0
        %832 = vmatprep.subr.mxu0 0.0
        %833 = vmatpush1.msra.mxu0 0.0
        %834 = vmatprep.subr.mxu0 0.0
        %835 = vmatpush1.msra.mxu0 0.0
        %836 = vmatprep.subr.mxu0 0.0
        %837 = vmatpush1.msra.mxu0 0.0
        %838 = vmatprep.subr.mxu0 0.0
        %839 = vmatpush1.msra.mxu0 0.0
        %840 = vmatprep.subr.mxu0 0.0
        %841 = vmatpush1.msra.mxu0 0.0
        %842 = vmatprep.subr.mxu0 0.0
        %843 = vmatpush1.msra.mxu0 0.0
        %844 = vmatprep.subr.mxu0 0.0
        %845 = vmatpush1.msra.mxu0 0.0
        %846 = vmatprep.subr.mxu0 0.0
        %847 = vmatpush1.msra.mxu0 0.0
        %848 = vmatprep.subr.mxu0 0.0
        %849 = vmatpush1.msra.mxu0 0.0
        %850 = vmatprep.subr.mxu0 0.0
        %851 = vmatpush1.msra.mxu0 0.0
        %852 = vmatprep.subr.mxu0 0.0
        %853 = vmatpush1.msra.mxu0 0.0
        %854 = vmatprep.subr.mxu0 0.0
        %855 = vmatpush1.msra.mxu0 0.0
        %856 = vmatprep.mubr.f32.mxu0 0.0
        %857 = vmatmul.mubr.f32.gmra.mrb[0].mxu0 %v787
        %v858 = vpop.f32.mrb[0].mxu0
        %v859 = vadd.f32 0.0, %v858
        %v860 = vpop.f32.mrb[0].mxu0
        %v861 = vadd.f32 0.0, %v860
        %862 = vmatprep.mubr.f32.mxu0 0.0
        %863 = vmatmul.mubr.f32.gmra.mrb[0].mxu0 %v790
        %v864 = vpop.f32.mrb[0].mxu0
        %v865 = vadd.f32 0.0, %v864
        %v866 = vpop.f32.mrb[0].mxu0
        %v867 = vadd.f32 0.0, %v866
        %868 = vdwg.mxu0
        %v869 = vadd.f32 %v779, %v859
        %v870 = vadd.f32 %v780, %v861
        %v871 = vadd.f32 %v781, %v865
        %v872 = vadd.f32 %v782, %v867
        %873 = vrot.lane.b32.xlu0 %v255, 127
        %v874 = vpop.permute.xlu0 %873
        %875 = vrot.lane.b32.xlu0 %v256, 127
        %v876 = vpop.permute.xlu0 %875
        %877 = vrot.lane.b32.xlu0 %v257, 127
        %v878 = vpop.permute.xlu0 %877
        %879 = vrot.lane.b32.xlu0 %v258, 127
        %v880 = vpop.permute.xlu0 %879
        %881 = vrot.lane.b32.xlu0 %v259, 127
        %v882 = vpop.permute.xlu0 %881
        %883 = vrot.lane.b32.xlu0 %v260, 127
        %v884 = vpop.permute.xlu0 %883
        %885 = vrot.lane.b32.xlu0 %v261, 127
        %v886 = vpop.permute.xlu0 %885
        %887 = vrot.lane.b32.xlu0 %v262, 127
        %v888 = vpop.permute.xlu0 %887
        %vm889 = vcmask 1039360
        %v890 = vsel %vm889, %v874, %v876
        %v891 = vsel %vm889, %v878, %v880
        %v892 = vsel %vm889, %v882, %v884
        %v893 = vsel %vm889, %v886, %v888
        %v902 = vsel %vm889, %v876, 0.0
        %v903 = vsel %vm889, %v880, 0.0
        %v904 = vsel %vm889, %v884, 0.0
        %v905 = vsel %vm889, %v888, 0.0
        %s906 = scalar_lea.vmem [#allocation5], 80
        %v907 = vld [vmem:[%s906] sm:$0xff]
        %v908 = vld [vmem:[%s906 + $0x8] sm:$0xff]
        %v910 = vsel %vm362, %v907, 0
        %v913 = vsel %vm362, %v908, 0
        %915 = vmatprep.subr.mxu0 %v902
        %916 = vmatpush1.msra.mxu0 %v890
        %917 = vmatprep.subr.mxu0 %v903
        %918 = vmatpush1.msra.mxu0 %v891
        %919 = vmatprep.subr.mxu0 %v904
        %920 = vmatpush1.msra.mxu0 %v892
        %921 = vmatprep.subr.mxu0 %v905
        %922 = vmatpush1.msra.mxu0 %v893
        %923 = vmatprep.subr.mxu0 0.0
        %924 = vmatpush1.msra.mxu0 0.0
        %925 = vmatprep.subr.mxu0 0.0
        %926 = vmatpush1.msra.mxu0 0.0
        %927 = vmatprep.subr.mxu0 0.0
        %928 = vmatpush1.msra.mxu0 0.0
        %929 = vmatprep.subr.mxu0 0.0
        %930 = vmatpush1.msra.mxu0 0.0
        %931 = vmatprep.subr.mxu0 0.0
        %932 = vmatpush1.msra.mxu0 0.0
        %933 = vmatprep.subr.mxu0 0.0
        %934 = vmatpush1.msra.mxu0 0.0
        %935 = vmatprep.subr.mxu0 0.0
        %936 = vmatpush1.msra.mxu0 0.0
        %937 = vmatprep.subr.mxu0 0.0
        %938 = vmatpush1.msra.mxu0 0.0
        %939 = vmatprep.subr.mxu0 0.0
        %940 = vmatpush1.msra.mxu0 0.0
        %941 = vmatprep.subr.mxu0 0.0
        %942 = vmatpush1.msra.mxu0 0.0
        %943 = vmatprep.subr.mxu0 0.0
        %944 = vmatpush1.msra.mxu0 0.0
        %945 = vmatprep.subr.mxu0 0.0
        %946 = vmatpush1.msra.mxu0 0.0
        %947 = vmatprep.subr.mxu0 0.0
        %948 = vmatpush1.msra.mxu0 0.0
        %949 = vmatprep.subr.mxu0 0.0
        %950 = vmatpush1.msra.mxu0 0.0
        %951 = vmatprep.subr.mxu0 0.0
        %952 = vmatpush1.msra.mxu0 0.0
        %953 = vmatprep.subr.mxu0 0.0
        %954 = vmatpush1.msra.mxu0 0.0
        %955 = vmatprep.subr.mxu0 0.0
        %956 = vmatpush1.msra.mxu0 0.0
        %957 = vmatprep.subr.mxu0 0.0
        %958 = vmatpush1.msra.mxu0 0.0
        %959 = vmatprep.subr.mxu0 0.0
        %960 = vmatpush1.msra.mxu0 0.0
        %961 = vmatprep.subr.mxu0 0.0
        %962 = vmatpush1.msra.mxu0 0.0
        %963 = vmatprep.subr.mxu0 0.0
        %964 = vmatpush1.msra.mxu0 0.0
        %965 = vmatprep.subr.mxu0 0.0
        %966 = vmatpush1.msra.mxu0 0.0
        %967 = vmatprep.subr.mxu0 0.0
        %968 = vmatpush1.msra.mxu0 0.0
        %969 = vmatprep.subr.mxu0 0.0
        %970 = vmatpush1.msra.mxu0 0.0
        %971 = vmatprep.subr.mxu0 0.0
        %972 = vmatpush1.msra.mxu0 0.0
        %973 = vmatprep.subr.mxu0 0.0
        %974 = vmatpush1.msra.mxu0 0.0
        %975 = vmatprep.subr.mxu0 0.0
        %976 = vmatpush1.msra.mxu0 0.0
        %977 = vmatprep.subr.mxu0 0.0
        %978 = vmatpush1.msra.mxu0 0.0
        %979 = vmatprep.mubr.f32.mxu0 0.0
        %980 = vmatmul.mubr.f32.gmra.mrb[0].mxu0 %v910
        %v981 = vpop.f32.mrb[0].mxu0
        %v982 = vadd.f32 0.0, %v981
        %v983 = vpop.f32.mrb[0].mxu0
        %v984 = vadd.f32 0.0, %v983
        %985 = vmatprep.mubr.f32.mxu0 0.0
        %986 = vmatmul.mubr.f32.gmra.mrb[0].mxu0 %v913
        %v987 = vpop.f32.mrb[0].mxu0
        %v988 = vadd.f32 0.0, %v987
        %v989 = vpop.f32.mrb[0].mxu0
        %v990 = vadd.f32 0.0, %v989
        %991 = vdwg.mxu0
        %v992 = vadd.f32 %v869, %v982
        %v993 = vadd.f32 %v870, %v984
        %v994 = vadd.f32 %v871, %v988
        %v995 = vadd.f32 %v872, %v990
        %996 = vrot.lane.b32.xlu0 %v267, 113
        %v997 = vpop.permute.xlu0 %996
        %998 = vrot.lane.b32.xlu0 %v268, 113
        %v999 = vpop.permute.xlu0 %998
        %1000 = vrot.lane.b32.xlu0 %v269, 113
        %v1001 = vpop.permute.xlu0 %1000
        %1002 = vrot.lane.b32.xlu0 %v270, 113
        %v1003 = vpop.permute.xlu0 %1002
        %1004 = vrot.lane.b32.xlu0 %v271, 113
        %v1005 = vpop.permute.xlu0 %1004
        %1006 = vrot.lane.b32.xlu0 %v272, 113
        %v1007 = vpop.permute.xlu0 %1006
        %1008 = vrot.lane.b32.xlu0 %v273, 113
        %v1009 = vpop.permute.xlu0 %1008
        %1010 = vrot.lane.b32.xlu0 %v274, 113
        %v1011 = vpop.permute.xlu0 %1010
        %vm1012 = vcmask 924672
        %v1013 = vsel %vm1012, %v997, %v999
        %v1014 = vsel %vm1012, %v1001, %v1003
        %v1015 = vsel %vm1012, %v1005, %v1007
        %v1016 = vsel %vm1012, %v1009, %v1011
        %v1025 = vsel %vm1012, %v999, 0.0
        %v1026 = vsel %vm1012, %v1003, 0.0
        %v1027 = vsel %vm1012, %v1007, 0.0
        %v1028 = vsel %vm1012, %v1011, 0.0
        %s1029 = scalar_lea.vmem [#allocation5], 96
        %v1030 = vld [vmem:[%s1029] sm:$0xff]
        %v1031 = vld [vmem:[%s1029 + $0x8] sm:$0xff]
        %v1033 = vsel %vm362, %v1030, 0
        %v1036 = vsel %vm362, %v1031, 0
        %1038 = vmatprep.subr.mxu0 %v1025
        %1039 = vmatpush1.msra.mxu0 %v1013
        %1040 = vmatprep.subr.mxu0 %v1026
        %1041 = vmatpush1.msra.mxu0 %v1014
        %1042 = vmatprep.subr.mxu0 %v1027
        %1043 = vmatpush1.msra.mxu0 %v1015
        %1044 = vmatprep.subr.mxu0 %v1028
        %1045 = vmatpush1.msra.mxu0 %v1016
        %1046 = vmatprep.subr.mxu0 0.0
        %1047 = vmatpush1.msra.mxu0 0.0
        %1048 = vmatprep.subr.mxu0 0.0
        %1049 = vmatpush1.msra.mxu0 0.0
        %1050 = vmatprep.subr.mxu0 0.0
        %1051 = vmatpush1.msra.mxu0 0.0
        %1052 = vmatprep.subr.mxu0 0.0
        %1053 = vmatpush1.msra.mxu0 0.0
        %1054 = vmatprep.subr.mxu0 0.0
        %1055 = vmatpush1.msra.mxu0 0.0
        %1056 = vmatprep.subr.mxu0 0.0
        %1057 = vmatpush1.msra.mxu0 0.0
        %1058 = vmatprep.subr.mxu0 0.0
        %1059 = vmatpush1.msra.mxu0 0.0
        %1060 = vmatprep.subr.mxu0 0.0
        %1061 = vmatpush1.msra.mxu0 0.0
        %1062 = vmatprep.subr.mxu0 0.0
        %1063 = vmatpush1.msra.mxu0 0.0
        %1064 = vmatprep.subr.mxu0 0.0
        %1065 = vmatpush1.msra.mxu0 0.0
        %1066 = vmatprep.subr.mxu0 0.0
        %1067 = vmatpush1.msra.mxu0 0.0
        %1068 = vmatprep.subr.mxu0 0.0
        %1069 = vmatpush1.msra.mxu0 0.0
        %1070 = vmatprep.subr.mxu0 0.0
        %1071 = vmatpush1.msra.mxu0 0.0
        %1072 = vmatprep.subr.mxu0 0.0
        %1073 = vmatpush1.msra.mxu0 0.0
        %1074 = vmatprep.subr.mxu0 0.0
        %1075 = vmatpush1.msra.mxu0 0.0
        %1076 = vmatprep.subr.mxu0 0.0
        %1077 = vmatpush1.msra.mxu0 0.0
        %1078 = vmatprep.subr.mxu0 0.0
        %1079 = vmatpush1.msra.mxu0 0.0
        %1080 = vmatprep.subr.mxu0 0.0
        %1081 = vmatpush1.msra.mxu0 0.0
        %1082 = vmatprep.subr.mxu0 0.0
        %1083 = vmatpush1.msra.mxu0 0.0
        %1084 = vmatprep.subr.mxu0 0.0
        %1085 = vmatpush1.msra.mxu0 0.0
        %1086 = vmatprep.subr.mxu0 0.0
        %1087 = vmatpush1.msra.mxu0 0.0
        %1088 = vmatprep.subr.mxu0 0.0
        %1089 = vmatpush1.msra.mxu0 0.0
        %1090 = vmatprep.subr.mxu0 0.0
        %1091 = vmatpush1.msra.mxu0 0.0
        %1092 = vmatprep.subr.mxu0 0.0
        %1093 = vmatpush1.msra.mxu0 0.0
        %1094 = vmatprep.subr.mxu0 0.0
        %1095 = vmatpush1.msra.mxu0 0.0
        %1096 = vmatprep.subr.mxu0 0.0
        %1097 = vmatpush1.msra.mxu0 0.0
        %1098 = vmatprep.subr.mxu0 0.0
        %1099 = vmatpush1.msra.mxu0 0.0
        %1100 = vmatprep.subr.mxu0 0.0
        %1101 = vmatpush1.msra.mxu0 0.0
        %1102 = vmatprep.mubr.f32.mxu0 0.0
        %1103 = vmatmul.mubr.f32.gmra.mrb[0].mxu0 %v1033
        %v1104 = vpop.f32.mrb[0].mxu0
        %v1105 = vadd.f32 0.0, %v1104
        %v1106 = vpop.f32.mrb[0].mxu0
        %v1107 = vadd.f32 0.0, %v1106
        %1108 = vmatprep.mubr.f32.mxu0 0.0
        %1109 = vmatmul.mubr.f32.gmra.mrb[0].mxu0 %v1036
        %v1110 = vpop.f32.mrb[0].mxu0
        %v1111 = vadd.f32 0.0, %v1110
        %v1112 = vpop.f32.mrb[0].mxu0
        %v1113 = vadd.f32 0.0, %v1112
        %1114 = vdwg.mxu0
        %v1115 = vadd.f32 %v992, %v1105
        %v1116 = vadd.f32 %v993, %v1107
        %v1117 = vadd.f32 %v994, %v1111
        %v1118 = vadd.f32 %v995, %v1113
        %1119 = vrot.lane.b32.xlu0 %v243, 112
        %v1120 = vpop.permute.xlu0 %1119
        %1121 = vrot.lane.b32.xlu0 %v244, 112
        %v1122 = vpop.permute.xlu0 %1121
        %1123 = vrot.lane.b32.xlu0 %v245, 112
        %v1124 = vpop.permute.xlu0 %1123
        %1125 = vrot.lane.b32.xlu0 %v246, 112
        %v1126 = vpop.permute.xlu0 %1125
        %1127 = vrot.lane.b32.xlu0 %v247, 112
        %v1128 = vpop.permute.xlu0 %1127
        %1129 = vrot.lane.b32.xlu0 %v248, 112
        %v1130 = vpop.permute.xlu0 %1129
        %1131 = vrot.lane.b32.xlu0 %v249, 112
        %v1132 = vpop.permute.xlu0 %1131
        %1133 = vrot.lane.b32.xlu0 %v250, 112
        %v1134 = vpop.permute.xlu0 %1133
        %vm1135 = vcmask 916480
        %v1136 = vsel %vm1135, %v1120, %v1122
        %v1137 = vsel %vm1135, %v1124, %v1126
        %v1138 = vsel %vm1135, %v1128, %v1130
        %v1139 = vsel %vm1135, %v1132, %v1134
        %v1148 = vsel %vm1135, %v1122, 0.0
        %v1149 = vsel %vm1135, %v1126, 0.0
        %v1150 = vsel %vm1135, %v1130, 0.0
        %v1151 = vsel %vm1135, %v1134, 0.0
        %s1152 = scalar_lea.vmem [#allocation5], 112
        %v1153 = vld [vmem:[%s1152] sm:$0xff]
        %v1154 = vld [vmem:[%s1152 + $0x8] sm:$0xff]
        %v1156 = vsel %vm362, %v1153, 0
        %v1159 = vsel %vm362, %v1154, 0
        %1161 = vmatprep.subr.mxu0 %v1148
        %1162 = vmatpush1.msra.mxu0 %v1136
        %1163 = vmatprep.subr.mxu0 %v1149
        %1164 = vmatpush1.msra.mxu0 %v1137
        %1165 = vmatprep.subr.mxu0 %v1150
        %1166 = vmatpush1.msra.mxu0 %v1138
        %1167 = vmatprep.subr.mxu0 %v1151
        %1168 = vmatpush1.msra.mxu0 %v1139
        %1169 = vmatprep.subr.mxu0 0.0
        %1170 = vmatpush1.msra.mxu0 0.0
        %1171 = vmatprep.subr.mxu0 0.0
        %1172 = vmatpush1.msra.mxu0 0.0
        %1173 = vmatprep.subr.mxu0 0.0
        %1174 = vmatpush1.msra.mxu0 0.0
        %1175 = vmatprep.subr.mxu0 0.0
        %1176 = vmatpush1.msra.mxu0 0.0
        %1177 = vmatprep.subr.mxu0 0.0
        %1178 = vmatpush1.msra.mxu0 0.0
        %1179 = vmatprep.subr.mxu0 0.0
        %1180 = vmatpush1.msra.mxu0 0.0
        %1181 = vmatprep.subr.mxu0 0.0
        %1182 = vmatpush1.msra.mxu0 0.0
        %1183 = vmatprep.subr.mxu0 0.0
        %1184 = vmatpush1.msra.mxu0 0.0
        %1185 = vmatprep.subr.mxu0 0.0
        %1186 = vmatpush1.msra.mxu0 0.0
        %1187 = vmatprep.subr.mxu0 0.0
        %1188 = vmatpush1.msra.mxu0 0.0
        %1189 = vmatprep.subr.mxu0 0.0
        %1190 = vmatpush1.msra.mxu0 0.0
        %1191 = vmatprep.subr.mxu0 0.0
        %1192 = vmatpush1.msra.mxu0 0.0
        %1193 = vmatprep.subr.mxu0 0.0
        %1194 = vmatpush1.msra.mxu0 0.0
        %1195 = vmatprep.subr.mxu0 0.0
        %1196 = vmatpush1.msra.mxu0 0.0
        %1197 = vmatprep.subr.mxu0 0.0
        %1198 = vmatpush1.msra.mxu0 0.0
        %1199 = vmatprep.subr.mxu0 0.0
        %1200 = vmatpush1.msra.mxu0 0.0
        %1201 = vmatprep.subr.mxu0 0.0
        %1202 = vmatpush1.msra.mxu0 0.0
        %1203 = vmatprep.subr.mxu0 0.0
        %1204 = vmatpush1.msra.mxu0 0.0
        %1205 = vmatprep.subr.mxu0 0.0
        %1206 = vmatpush1.msra.mxu0 0.0
        %1207 = vmatprep.subr.mxu0 0.0
        %1208 = vmatpush1.msra.mxu0 0.0
        %1209 = vmatprep.subr.mxu0 0.0
        %1210 = vmatpush1.msra.mxu0 0.0
        %1211 = vmatprep.subr.mxu0 0.0
        %1212 = vmatpush1.msra.mxu0 0.0
        %1213 = vmatprep.subr.mxu0 0.0
        %1214 = vmatpush1.msra.mxu0 0.0
        %1215 = vmatprep.subr.mxu0 0.0
        %1216 = vmatpush1.msra.mxu0 0.0
        %1217 = vmatprep.subr.mxu0 0.0
        %1218 = vmatpush1.msra.mxu0 0.0
        %1219 = vmatprep.subr.mxu0 0.0
        %1220 = vmatpush1.msra.mxu0 0.0
        %1221 = vmatprep.subr.mxu0 0.0
        %1222 = vmatpush1.msra.mxu0 0.0
        %1223 = vmatprep.subr.mxu0 0.0
        %1224 = vmatpush1.msra.mxu0 0.0
        %1225 = vmatprep.mubr.f32.mxu0 0.0
        %1226 = vmatmul.mubr.f32.gmra.mrb[0].mxu0 %v1156
        %v1227 = vpop.f32.mrb[0].mxu0
        %v1228 = vadd.f32 0.0, %v1227
        %v1229 = vpop.f32.mrb[0].mxu0
        %v1230 = vadd.f32 0.0, %v1229
        %1231 = vmatprep.mubr.f32.mxu0 0.0
        %1232 = vmatmul.mubr.f32.gmra.mrb[0].mxu0 %v1159
        %v1233 = vpop.f32.mrb[0].mxu0
        %v1234 = vadd.f32 0.0, %v1233
        %v1235 = vpop.f32.mrb[0].mxu0
        %v1236 = vadd.f32 0.0, %v1235
        %1237 = vdwg.mxu0
        %v1238 = vadd.f32 %v1115, %v1228
        %v1239 = vadd.f32 %v1116, %v1230
        %v1240 = vadd.f32 %v1117, %v1234
        %v1241 = vadd.f32 %v1118, %v1236
        %1242 = vrot.lane.b32.xlu0 %v255, 111
        %v1243 = vpop.permute.xlu0 %1242
        %1244 = vrot.lane.b32.xlu0 %v256, 111
        %v1245 = vpop.permute.xlu0 %1244
        %1246 = vrot.lane.b32.xlu0 %v257, 111
        %v1247 = vpop.permute.xlu0 %1246
        %1248 = vrot.lane.b32.xlu0 %v258, 111
        %v1249 = vpop.permute.xlu0 %1248
        %1250 = vrot.lane.b32.xlu0 %v259, 111
        %v1251 = vpop.permute.xlu0 %1250
        %1252 = vrot.lane.b32.xlu0 %v260, 111
        %v1253 = vpop.permute.xlu0 %1252
        %1254 = vrot.lane.b32.xlu0 %v261, 111
        %v1255 = vpop.permute.xlu0 %1254
        %1256 = vrot.lane.b32.xlu0 %v262, 111
        %v1257 = vpop.permute.xlu0 %1256
        %vm1258 = vcmask 908288
        %v1259 = vsel %vm1258, %v1243, %v1245
        %v1260 = vsel %vm1258, %v1247, %v1249
        %v1261 = vsel %vm1258, %v1251, %v1253
        %v1262 = vsel %vm1258, %v1255, %v1257
        %v1271 = vsel %vm1258, %v1245, 0.0
        %v1272 = vsel %vm1258, %v1249, 0.0
        %v1273 = vsel %vm1258, %v1253, 0.0
        %v1274 = vsel %vm1258, %v1257, 0.0
        %s1275 = scalar_lea.vmem [#allocation5], 128
        %v1276 = vld [vmem:[%s1275] sm:$0xff]
        %v1277 = vld [vmem:[%s1275 + $0x8] sm:$0xff]
        %v1279 = vsel %vm362, %v1276, 0
        %v1282 = vsel %vm362, %v1277, 0
        %1284 = vmatprep.subr.mxu0 %v1271
        %1285 = vmatpush1.msra.mxu0 %v1259
        %1286 = vmatprep.subr.mxu0 %v1272
        %1287 = vmatpush1.msra.mxu0 %v1260
        %1288 = vmatprep.subr.mxu0 %v1273
        %1289 = vmatpush1.msra.mxu0 %v1261
        %1290 = vmatprep.subr.mxu0 %v1274
        %1291 = vmatpush1.msra.mxu0 %v1262
        %1292 = vmatprep.subr.mxu0 0.0
        %1293 = vmatpush1.msra.mxu0 0.0
        %1294 = vmatprep.subr.mxu0 0.0
        %1295 = vmatpush1.msra.mxu0 0.0
        %1296 = vmatprep.subr.mxu0 0.0
        %1297 = vmatpush1.msra.mxu0 0.0
        %1298 = vmatprep.subr.mxu0 0.0
        %1299 = vmatpush1.msra.mxu0 0.0
        %1300 = vmatprep.subr.mxu0 0.0
        %1301 = vmatpush1.msra.mxu0 0.0
        %1302 = vmatprep.subr.mxu0 0.0
        %1303 = vmatpush1.msra.mxu0 0.0
        %1304 = vmatprep.subr.mxu0 0.0
        %1305 = vmatpush1.msra.mxu0 0.0
        %1306 = vmatprep.subr.mxu0 0.0
        %1307 = vmatpush1.msra.mxu0 0.0
        %1308 = vmatprep.subr.mxu0 0.0
        %1309 = vmatpush1.msra.mxu0 0.0
        %1310 = vmatprep.subr.mxu0 0.0
        %1311 = vmatpush1.msra.mxu0 0.0
        %1312 = vmatprep.subr.mxu0 0.0
        %1313 = vmatpush1.msra.mxu0 0.0
        %1314 = vmatprep.subr.mxu0 0.0
        %1315 = vmatpush1.msra.mxu0 0.0
        %1316 = vmatprep.subr.mxu0 0.0
        %1317 = vmatpush1.msra.mxu0 0.0
        %1318 = vmatprep.subr.mxu0 0.0
        %1319 = vmatpush1.msra.mxu0 0.0
        %1320 = vmatprep.subr.mxu0 0.0
        %1321 = vmatpush1.msra.mxu0 0.0
        %1322 = vmatprep.subr.mxu0 0.0
        %1323 = vmatpush1.msra.mxu0 0.0
        %1324 = vmatprep.subr.mxu0 0.0
        %1325 = vmatpush1.msra.mxu0 0.0
        %1326 = vmatprep.subr.mxu0 0.0
        %1327 = vmatpush1.msra.mxu0 0.0
        %1328 = vmatprep.subr.mxu0 0.0
        %1329 = vmatpush1.msra.mxu0 0.0
        %1330 = vmatprep.subr.mxu0 0.0
        %1331 = vmatpush1.msra.mxu0 0.0
        %1332 = vmatprep.subr.mxu0 0.0
        %1333 = vmatpush1.msra.mxu0 0.0
        %1334 = vmatprep.subr.mxu0 0.0
        %1335 = vmatpush1.msra.mxu0 0.0
        %1336 = vmatprep.subr.mxu0 0.0
        %1337 = vmatpush1.msra.mxu0 0.0
        %1338 = vmatprep.subr.mxu0 0.0
        %1339 = vmatpush1.msra.mxu0 0.0
        %1340 = vmatprep.subr.mxu0 0.0
        %1341 = vmatpush1.msra.mxu0 0.0
        %1342 = vmatprep.subr.mxu0 0.0
        %1343 = vmatpush1.msra.mxu0 0.0
        %1344 = vmatprep.subr.mxu0 0.0
        %1345 = vmatpush1.msra.mxu0 0.0
        %1346 = vmatprep.subr.mxu0 0.0
        %1347 = vmatpush1.msra.mxu0 0.0
        %1348 = vmatprep.mubr.f32.mxu0 0.0
        %1349 = vmatmul.mubr.f32.gmra.mrb[0].mxu0 %v1279
        %v1350 = vpop.f32.mrb[0].mxu0
        %v1351 = vadd.f32 0.0, %v1350
        %v1352 = vpop.f32.mrb[0].mxu0
        %v1353 = vadd.f32 0.0, %v1352
        %1354 = vmatprep.mubr.f32.mxu0 0.0
        %1355 = vmatmul.mubr.f32.gmra.mrb[0].mxu0 %v1282
        %v1356 = vpop.f32.mrb[0].mxu0
        %v1357 = vadd.f32 0.0, %v1356
        %v1358 = vpop.f32.mrb[0].mxu0
        %v1359 = vadd.f32 0.0, %v1358
        %1360 = vdwg.mxu0
        %v1361 = vadd.f32 %v1238, %v1351
        %v1362 = vadd.f32 %v1239, %v1353
        %v1363 = vadd.f32 %v1240, %v1357
        %v1364 = vadd.f32 %v1241, %v1359
        %v1365 = vmax.f32 %v1361, 0.0
        %v1366 = vmax.f32 %v1362, 0.0
        %v1367 = vmax.f32 %v1363, 0.0
        %v1368 = vmax.f32 %v1364, 0.0
        %v1369 = vld [vmem:[%s2] sm:$0xff]
        %v1370 = vld [vmem:[%s2 + $0x8] sm:$0xff]
        %v1371 = vld [vmem:[%s2 + $0x10] sm:$0xff]
        %v1372 = vld [vmem:[%s2 + $0x18] sm:$0xff]
        %v1374 = vsel %vm342, %v1369, 0
        %v1377 = vsel %vm342, %v1370, 0
        %v1380 = vsel %vm342, %v1371, 0
        %v1383 = vsel %vm342, %v1372, 0
        %1385 = vmatprep.subr.mxu0 %v1366
        %1386 = vmatpush1.msra.mxu0 %v1365
        %1387 = vmatprep.subr.mxu0 %v1368
        %1388 = vmatpush1.msra.mxu0 %v1367
        %1389 = vmatprep.subr.mxu0 0.0
        %1390 = vmatpush1.msra.mxu0 0.0
        %1391 = vmatprep.subr.mxu0 0.0
        %1392 = vmatpush1.msra.mxu0 0.0
        %1393 = vmatprep.subr.mxu0 0.0
        %1394 = vmatpush1.msra.mxu0 0.0
        %1395 = vmatprep.subr.mxu0 0.0
        %1396 = vmatpush1.msra.mxu0 0.0
        %1397 = vmatprep.subr.mxu0 0.0
        %1398 = vmatpush1.msra.mxu0 0.0
        %1399 = vmatprep.subr.mxu0 0.0
        %1400 = vmatpush1.msra.mxu0 0.0
        %1401 = vmatprep.subr.mxu0 0.0
        %1402 = vmatpush1.msra.mxu0 0.0
        %1403 = vmatprep.subr.mxu0 0.0
        %1404 = vmatpush1.msra.mxu0 0.0
        %1405 = vmatprep.subr.mxu0 0.0
        %1406 = vmatpush1.msra.mxu0 0.0
        %1407 = vmatprep.subr.mxu0 0.0
        %1408 = vmatpush1.msra.mxu0 0.0
        %1409 = vmatprep.subr.mxu0 0.0
        %1410 = vmatpush1.msra.mxu0 0.0
        %1411 = vmatprep.subr.mxu0 0.0
        %1412 = vmatpush1.msra.mxu0 0.0
        %1413 = vmatprep.subr.mxu0 0.0
        %1414 = vmatpush1.msra.mxu0 0.0
        %1415 = vmatprep.subr.mxu0 0.0
        %1416 = vmatpush1.msra.mxu0 0.0
        %1417 = vmatprep.subr.mxu0 0.0
        %1418 = vmatpush1.msra.mxu0 0.0
        %1419 = vmatprep.subr.mxu0 0.0
        %1420 = vmatpush1.msra.mxu0 0.0
        %1421 = vmatprep.subr.mxu0 0.0
        %1422 = vmatpush1.msra.mxu0 0.0
        %1423 = vmatprep.subr.mxu0 0.0
        %1424 = vmatpush1.msra.mxu0 0.0
        %1425 = vmatprep.subr.mxu0 0.0
        %1426 = vmatpush1.msra.mxu0 0.0
        %1427 = vmatprep.subr.mxu0 0.0
        %1428 = vmatpush1.msra.mxu0 0.0
        %1429 = vmatprep.subr.mxu0 0.0
        %1430 = vmatpush1.msra.mxu0 0.0
        %1431 = vmatprep.subr.mxu0 0.0
        %1432 = vmatpush1.msra.mxu0 0.0
        %1433 = vmatprep.subr.mxu0 0.0
        %1434 = vmatpush1.msra.mxu0 0.0
        %1435 = vmatprep.subr.mxu0 0.0
        %1436 = vmatpush1.msra.mxu0 0.0
        %1437 = vmatprep.subr.mxu0 0.0
        %1438 = vmatpush1.msra.mxu0 0.0
        %1439 = vmatprep.subr.mxu0 0.0
        %1440 = vmatpush1.msra.mxu0 0.0
        %1441 = vmatprep.subr.mxu0 0.0
        %1442 = vmatpush1.msra.mxu0 0.0
        %1443 = vmatprep.subr.mxu0 0.0
        %1444 = vmatpush1.msra.mxu0 0.0
        %1445 = vmatprep.subr.mxu0 0.0
        %1446 = vmatpush1.msra.mxu0 0.0
        %1447 = vmatprep.subr.mxu0 0.0
        %1448 = vmatpush1.msra.mxu0 0.0
        %1449 = vmatprep.mubr.f32.mxu0 0.0
        %1450 = vmatmul.mubr.f32.gmra.mrb[0].mxu0 %v1374
        %v1451 = vpop.f32.mrb[0].mxu0
        %v1452 = vadd.f32 0.0, %v1451
        %v1453 = vpop.f32.mrb[0].mxu0
        %v1454 = vadd.f32 0.0, %v1453
        %1455 = vmatprep.mubr.f32.mxu0 0.0
        %1456 = vmatmul.mubr.f32.gmra.mrb[0].mxu0 %v1377
        %v1457 = vpop.f32.mrb[0].mxu0
        %v1458 = vadd.f32 0.0, %v1457
        %v1459 = vpop.f32.mrb[0].mxu0
        %v1460 = vadd.f32 0.0, %v1459
        %1461 = vmatprep.mubr.f32.mxu0 0.0
        %1462 = vmatmul.mubr.f32.gmra.mrb[0].mxu0 %v1380
        %v1463 = vpop.f32.mrb[0].mxu0
        %v1464 = vadd.f32 0.0, %v1463
        %v1465 = vpop.f32.mrb[0].mxu0
        %v1466 = vadd.f32 0.0, %v1465
        %1467 = vmatprep.mubr.f32.mxu0 0.0
        %1468 = vmatmul.mubr.f32.gmra.mrb[0].mxu0 %v1383
        %v1469 = vpop.f32.mrb[0].mxu0
        %v1470 = vadd.f32 0.0, %v1469
        %v1471 = vpop.f32.mrb[0].mxu0
        %v1472 = vadd.f32 0.0, %v1471
        %1473 = vdwg.mxu0
        %v1474 = vadd.f32 %v235, %v1452
        %v1475 = vadd.f32 %v236, %v1454
        %v1476 = vadd.f32 %v237, %v1458
        %v1477 = vadd.f32 %v238, %v1460
        %v1478 = vadd.f32 %v239, %v1464
        %v1479 = vadd.f32 %v240, %v1466
        %v1480 = vadd.f32 %v241, %v1470
        %v1481 = vadd.f32 %v242, %v1472
        %v1482 = vmax.f32 %v1474, 0.0
        %v1483 = vmax.f32 %v1475, 0.0
        %v1484 = vmax.f32 %v1476, 0.0
        %v1485 = vmax.f32 %v1477, 0.0
        %v1486 = vmax.f32 %v1478, 0.0
        %v1487 = vmax.f32 %v1479, 0.0
        %v1488 = vmax.f32 %v1480, 0.0
        %v1489 = vmax.f32 %v1481, 0.0
        %v1490 = vsel %vm253, %v1482, 0.0
        %v1491 = vsel %vm254, %v1483, 0.0
        %v1492 = vsel %vm253, %v1484, 0.0
        %v1493 = vsel %vm254, %v1485, 0.0
        %v1494 = vsel %vm253, %v1486, 0.0
        %v1495 = vsel %vm254, %v1487, 0.0
        %v1496 = vsel %vm253, %v1488, 0.0
        %v1497 = vsel %vm254, %v1489, 0.0
        %v1498 = vsel %vm265, %v1482, 0.0
        %v1499 = vsel %vm266, %v1483, 0.0
        %v1500 = vsel %vm265, %v1484, 0.0
        %v1501 = vsel %vm266, %v1485, 0.0
        %v1502 = vsel %vm265, %v1486, 0.0
        %v1503 = vsel %vm266, %v1487, 0.0
        %v1504 = vsel %vm265, %v1488, 0.0
        %v1505 = vsel %vm266, %v1489, 0.0
        %1514 = vrot.lane.b32.xlu0 %v1498, 17
        %v1515 = vpop.permute.xlu0 %1514
        %1516 = vrot.lane.b32.xlu0 %v1499, 17
        %v1517 = vpop.permute.xlu0 %1516
        %1518 = vrot.lane.b32.xlu0 %v1500, 17
        %v1519 = vpop.permute.xlu0 %1518
        %1520 = vrot.lane.b32.xlu0 %v1501, 17
        %v1521 = vpop.permute.xlu0 %1520
        %1522 = vrot.lane.b32.xlu0 %v1502, 17
        %v1523 = vpop.permute.xlu0 %1522
        %1524 = vrot.lane.b32.xlu0 %v1503, 17
        %v1525 = vpop.permute.xlu0 %1524
        %1526 = vrot.lane.b32.xlu0 %v1504, 17
        %v1527 = vpop.permute.xlu0 %1526
        %1528 = vrot.lane.b32.xlu0 %v1505, 17
        %v1529 = vpop.permute.xlu0 %1528
        %v1530 = vsel %vm299, %v1515, %v1517
        %v1531 = vsel %vm299, %v1519, %v1521
        %v1532 = vsel %vm299, %v1523, %v1525
        %v1533 = vsel %vm299, %v1527, %v1529
        %v1542 = vsel %vm299, 0.0, %v1515
        %v1543 = vsel %vm299, 0.0, %v1519
        %v1544 = vsel %vm299, 0.0, %v1523
        %v1545 = vsel %vm299, 0.0, %v1527
        %s1546 = scalar_lea.vmem [#allocation5], 144
        %v1547 = vld [vmem:[%s1546] sm:$0xff]
        %v1548 = vld [vmem:[%s1546 + $0x8] sm:$0xff]
        %1557 = vrot.lane.b32.xlu0 %v1482, 16
        %v1558 = vpop.permute.xlu0 %1557
        %1559 = vrot.lane.b32.xlu0 %v1483, 16
        %v1560 = vpop.permute.xlu0 %1559
        %1561 = vrot.lane.b32.xlu0 %v1484, 16
        %v1562 = vpop.permute.xlu0 %1561
        %1563 = vrot.lane.b32.xlu0 %v1485, 16
        %v1564 = vpop.permute.xlu0 %1563
        %1565 = vrot.lane.b32.xlu0 %v1486, 16
        %v1566 = vpop.permute.xlu0 %1565
        %1567 = vrot.lane.b32.xlu0 %v1487, 16
        %v1568 = vpop.permute.xlu0 %1567
        %1569 = vrot.lane.b32.xlu0 %v1488, 16
        %v1570 = vpop.permute.xlu0 %1569
        %1571 = vrot.lane.b32.xlu0 %v1489, 16
        %v1572 = vpop.permute.xlu0 %1571
        %v1573 = vsel %vm342, %v1558, %v1560
        %v1574 = vsel %vm342, %v1562, %v1564
        %v1575 = vsel %vm342, %v1566, %v1568
        %v1576 = vsel %vm342, %v1570, %v1572
        %v1585 = vsel %vm342, 0.0, %v1558
        %v1586 = vsel %vm342, 0.0, %v1562
        %v1587 = vsel %vm342, 0.0, %v1566
        %v1588 = vsel %vm342, 0.0, %v1570
        %s1589 = scalar_lea.vmem [#allocation5], 160
        %v1590 = vld [vmem:[%s1589] sm:$0xff]
        %v1591 = vld [vmem:[%s1589 + $0x8] sm:$0xff]
        %v1593 = vsel %vm362, %v1590, 0
        %v1596 = vsel %vm362, %v1591, 0
        %1598 = vmatprep.subr.mxu0 %v1573
        %1599 = vmatpush1.msra.mxu0 %v1585
        %1600 = vmatprep.subr.mxu0 %v1574
        %1601 = vmatpush1.msra.mxu0 %v1586
        %1602 = vmatprep.subr.mxu0 %v1575
        %1603 = vmatpush1.msra.mxu0 %v1587
        %1604 = vmatprep.subr.mxu0 %v1576
        %1605 = vmatpush1.msra.mxu0 %v1588
        %1606 = vmatprep.subr.mxu0 0.0
        %1607 = vmatpush1.msra.mxu0 0.0
        %1608 = vmatprep.subr.mxu0 0.0
        %1609 = vmatpush1.msra.mxu0 0.0
        %1610 = vmatprep.subr.mxu0 0.0
        %1611 = vmatpush1.msra.mxu0 0.0
        %1612 = vmatprep.subr.mxu0 0.0
        %1613 = vmatpush1.msra.mxu0 0.0
        %1614 = vmatprep.subr.mxu0 0.0
        %1615 = vmatpush1.msra.mxu0 0.0
        %1616 = vmatprep.subr.mxu0 0.0
        %1617 = vmatpush1.msra.mxu0 0.0
        %1618 = vmatprep.subr.mxu0 0.0
        %1619 = vmatpush1.msra.mxu0 0.0
        %1620 = vmatprep.subr.mxu0 0.0
        %1621 = vmatpush1.msra.mxu0 0.0
        %1622 = vmatprep.subr.mxu0 0.0
        %1623 = vmatpush1.msra.mxu0 0.0
        %1624 = vmatprep.subr.mxu0 0.0
        %1625 = vmatpush1.msra.mxu0 0.0
        %1626 = vmatprep.subr.mxu0 0.0
        %1627 = vmatpush1.msra.mxu0 0.0
        %1628 = vmatprep.subr.mxu0 0.0
        %1629 = vmatpush1.msra.mxu0 0.0
        %1630 = vmatprep.subr.mxu0 0.0
        %1631 = vmatpush1.msra.mxu0 0.0
        %1632 = vmatprep.subr.mxu0 0.0
        %1633 = vmatpush1.msra.mxu0 0.0
        %1634 = vmatprep.subr.mxu0 0.0
        %1635 = vmatpush1.msra.mxu0 0.0
        %1636 = vmatprep.subr.mxu0 0.0
        %1637 = vmatpush1.msra.mxu0 0.0
        %1638 = vmatprep.subr.mxu0 0.0
        %1639 = vmatpush1.msra.mxu0 0.0
        %1640 = vmatprep.subr.mxu0 0.0
        %1641 = vmatpush1.msra.mxu0 0.0
        %1642 = vmatprep.subr.mxu0 0.0
        %1643 = vmatpush1.msra.mxu0 0.0
        %1644 = vmatprep.subr.mxu0 0.0
        %1645 = vmatpush1.msra.mxu0 0.0
        %1646 = vmatprep.subr.mxu0 0.0
        %1647 = vmatpush1.msra.mxu0 0.0
        %1648 = vmatprep.subr.mxu0 0.0
        %1649 = vmatpush1.msra.mxu0 0.0
        %1650 = vmatprep.subr.mxu0 0.0
        %1651 = vmatpush1.msra.mxu0 0.0
        %1652 = vmatprep.subr.mxu0 0.0
        %1653 = vmatpush1.msra.mxu0 0.0
        %1654 = vmatprep.subr.mxu0 0.0
        %1655 = vmatpush1.msra.mxu0 0.0
        %1656 = vmatprep.subr.mxu0 0.0
        %1657 = vmatpush1.msra.mxu0 0.0
        %1658 = vmatprep.subr.mxu0 0.0
        %1659 = vmatpush1.msra.mxu0 0.0
        %1660 = vmatprep.subr.mxu0 0.0
        %1661 = vmatpush1.msra.mxu0 0.0
        %1662 = vmatprep.mubr.f32.mxu0 0.0
        %1663 = vmatmul.mubr.f32.gmra.mrb[0].mxu0 %v1593
        %v1664 = vpop.f32.mrb[0].mxu0
        %v1665 = vadd.f32 0.0, %v1664
        %v1666 = vpop.f32.mrb[0].mxu0
        %v1667 = vadd.f32 0.0, %v1666
        %1668 = vmatprep.mubr.f32.mxu0 0.0
        %1669 = vmatmul.mubr.f32.gmra.mrb[0].mxu0 %v1596
        %v1670 = vpop.f32.mrb[0].mxu0
        %v1671 = vadd.f32 0.0, %v1670
        %v1672 = vpop.f32.mrb[0].mxu0
        %v1673 = vadd.f32 0.0, %v1672
        %1674 = vdwg.mxu0
        %v1676 = vsel %vm362, %v1547, 0
        %v1679 = vsel %vm362, %v1548, 0
        %1681 = vmatprep.subr.mxu0 %v1530
        %1682 = vmatpush1.msra.mxu0 %v1542
        %1683 = vmatprep.subr.mxu0 %v1531
        %1684 = vmatpush1.msra.mxu0 %v1543
        %1685 = vmatprep.subr.mxu0 %v1532
        %1686 = vmatpush1.msra.mxu0 %v1544
        %1687 = vmatprep.subr.mxu0 %v1533
        %1688 = vmatpush1.msra.mxu0 %v1545
        %1689 = vmatprep.subr.mxu0 0.0
        %1690 = vmatpush1.msra.mxu0 0.0
        %1691 = vmatprep.subr.mxu0 0.0
        %1692 = vmatpush1.msra.mxu0 0.0
        %1693 = vmatprep.subr.mxu0 0.0
        %1694 = vmatpush1.msra.mxu0 0.0
        %1695 = vmatprep.subr.mxu0 0.0
        %1696 = vmatpush1.msra.mxu0 0.0
        %1697 = vmatprep.subr.mxu0 0.0
        %1698 = vmatpush1.msra.mxu0 0.0
        %1699 = vmatprep.subr.mxu0 0.0
        %1700 = vmatpush1.msra.mxu0 0.0
        %1701 = vmatprep.subr.mxu0 0.0
        %1702 = vmatpush1.msra.mxu0 0.0
        %1703 = vmatprep.subr.mxu0 0.0
        %1704 = vmatpush1.msra.mxu0 0.0
        %1705 = vmatprep.subr.mxu0 0.0
        %1706 = vmatpush1.msra.mxu0 0.0
        %1707 = vmatprep.subr.mxu0 0.0
        %1708 = vmatpush1.msra.mxu0 0.0
        %1709 = vmatprep.subr.mxu0 0.0
        %1710 = vmatpush1.msra.mxu0 0.0
        %1711 = vmatprep.subr.mxu0 0.0
        %1712 = vmatpush1.msra.mxu0 0.0
        %1713 = vmatprep.subr.mxu0 0.0
        %1714 = vmatpush1.msra.mxu0 0.0
        %1715 = vmatprep.subr.mxu0 0.0
        %1716 = vmatpush1.msra.mxu0 0.0
        %1717 = vmatprep.subr.mxu0 0.0
        %1718 = vmatpush1.msra.mxu0 0.0
        %1719 = vmatprep.subr.mxu0 0.0
        %1720 = vmatpush1.msra.mxu0 0.0
        %1721 = vmatprep.subr.mxu0 0.0
        %1722 = vmatpush1.msra.mxu0 0.0
        %1723 = vmatprep.subr.mxu0 0.0
        %1724 = vmatpush1.msra.mxu0 0.0
        %1725 = vmatprep.subr.mxu0 0.0
        %1726 = vmatpush1.msra.mxu0 0.0
        %1727 = vmatprep.subr.mxu0 0.0
        %1728 = vmatpush1.msra.mxu0 0.0
        %1729 = vmatprep.subr.mxu0 0.0
        %1730 = vmatpush1.msra.mxu0 0.0
        %1731 = vmatprep.subr.mxu0 0.0
        %1732 = vmatpush1.msra.mxu0 0.0
        %1733 = vmatprep.subr.mxu0 0.0
        %1734 = vmatpush1.msra.mxu0 0.0
        %1735 = vmatprep.subr.mxu0 0.0
        %1736 = vmatpush1.msra.mxu0 0.0
        %1737 = vmatprep.subr.mxu0 0.0
        %1738 = vmatpush1.msra.mxu0 0.0
        %1739 = vmatprep.subr.mxu0 0.0
        %1740 = vmatpush1.msra.mxu0 0.0
        %1741 = vmatprep.subr.mxu0 0.0
        %1742 = vmatpush1.msra.mxu0 0.0
        %1743 = vmatprep.subr.mxu0 0.0
        %1744 = vmatpush1.msra.mxu0 0.0
        %1745 = vmatprep.mubr.f32.mxu0 0.0
        %1746 = vmatmul.mubr.f32.gmra.mrb[0].mxu0 %v1676
        %v1747 = vpop.f32.mrb[0].mxu0
        %v1748 = vadd.f32 %v1665, %v1747
        %v1749 = vpop.f32.mrb[0].mxu0
        %v1750 = vadd.f32 %v1667, %v1749
        %1751 = vmatprep.mubr.f32.mxu0 0.0
        %1752 = vmatmul.mubr.f32.gmra.mrb[0].mxu0 %v1679
        %v1753 = vpop.f32.mrb[0].mxu0
        %v1754 = vadd.f32 %v1671, %v1753
        %v1755 = vpop.f32.mrb[0].mxu0
        %v1756 = vadd.f32 %v1673, %v1755
        %1757 = vdwg.mxu0
        %1766 = vrot.lane.b32.xlu0 %v1490, 15
        %v1767 = vpop.permute.xlu0 %1766
        %1768 = vrot.lane.b32.xlu0 %v1491, 15
        %v1769 = vpop.permute.xlu0 %1768
        %1770 = vrot.lane.b32.xlu0 %v1492, 15
        %v1771 = vpop.permute.xlu0 %1770
        %1772 = vrot.lane.b32.xlu0 %v1493, 15
        %v1773 = vpop.permute.xlu0 %1772
        %1774 = vrot.lane.b32.xlu0 %v1494, 15
        %v1775 = vpop.permute.xlu0 %1774
        %1776 = vrot.lane.b32.xlu0 %v1495, 15
        %v1777 = vpop.permute.xlu0 %1776
        %1778 = vrot.lane.b32.xlu0 %v1496, 15
        %v1779 = vpop.permute.xlu0 %1778
        %1780 = vrot.lane.b32.xlu0 %v1497, 15
        %v1781 = vpop.permute.xlu0 %1780
        %v1782 = vsel %vm553, %v1767, %v1769
        %v1783 = vsel %vm553, %v1771, %v1773
        %v1784 = vsel %vm553, %v1775, %v1777
        %v1785 = vsel %vm553, %v1779, %v1781
        %v1794 = vsel %vm553, 0.0, %v1767
        %v1795 = vsel %vm553, 0.0, %v1771
        %v1796 = vsel %vm553, 0.0, %v1775
        %v1797 = vsel %vm553, 0.0, %v1779
        %s1798 = scalar_lea.vmem [#allocation5], 176
        %v1799 = vld [vmem:[%s1798] sm:$0xff]
        %v1800 = vld [vmem:[%s1798 + $0x8] sm:$0xff]
        %v1802 = vsel %vm362, %v1799, 0
        %v1805 = vsel %vm362, %v1800, 0
        %1807 = vmatprep.subr.mxu0 %v1782
        %1808 = vmatpush1.msra.mxu0 %v1794
        %1809 = vmatprep.subr.mxu0 %v1783
        %1810 = vmatpush1.msra.mxu0 %v1795
        %1811 = vmatprep.subr.mxu0 %v1784
        %1812 = vmatpush1.msra.mxu0 %v1796
        %1813 = vmatprep.subr.mxu0 %v1785
        %1814 = vmatpush1.msra.mxu0 %v1797
        %1815 = vmatprep.subr.mxu0 0.0
        %1816 = vmatpush1.msra.mxu0 0.0
        %1817 = vmatprep.subr.mxu0 0.0
        %1818 = vmatpush1.msra.mxu0 0.0
        %1819 = vmatprep.subr.mxu0 0.0
        %1820 = vmatpush1.msra.mxu0 0.0
        %1821 = vmatprep.subr.mxu0 0.0
        %1822 = vmatpush1.msra.mxu0 0.0
        %1823 = vmatprep.subr.mxu0 0.0
        %1824 = vmatpush1.msra.mxu0 0.0
        %1825 = vmatprep.subr.mxu0 0.0
        %1826 = vmatpush1.msra.mxu0 0.0
        %1827 = vmatprep.subr.mxu0 0.0
        %1828 = vmatpush1.msra.mxu0 0.0
        %1829 = vmatprep.subr.mxu0 0.0
        %1830 = vmatpush1.msra.mxu0 0.0
        %1831 = vmatprep.subr.mxu0 0.0
        %1832 = vmatpush1.msra.mxu0 0.0
        %1833 = vmatprep.subr.mxu0 0.0
        %1834 = vmatpush1.msra.mxu0 0.0
        %1835 = vmatprep.subr.mxu0 0.0
        %1836 = vmatpush1.msra.mxu0 0.0
        %1837 = vmatprep.subr.mxu0 0.0
        %1838 = vmatpush1.msra.mxu0 0.0
        %1839 = vmatprep.subr.mxu0 0.0
        %1840 = vmatpush1.msra.mxu0 0.0
        %1841 = vmatprep.subr.mxu0 0.0
        %1842 = vmatpush1.msra.mxu0 0.0
        %1843 = vmatprep.subr.mxu0 0.0
        %1844 = vmatpush1.msra.mxu0 0.0
        %1845 = vmatprep.subr.mxu0 0.0
        %1846 = vmatpush1.msra.mxu0 0.0
        %1847 = vmatprep.subr.mxu0 0.0
        %1848 = vmatpush1.msra.mxu0 0.0
        %1849 = vmatprep.subr.mxu0 0.0
        %1850 = vmatpush1.msra.mxu0 0.0
        %1851 = vmatprep.subr.mxu0 0.0
        %1852 = vmatpush1.msra.mxu0 0.0
        %1853 = vmatprep.subr.mxu0 0.0
        %1854 = vmatpush1.msra.mxu0 0.0
        %1855 = vmatprep.subr.mxu0 0.0
        %1856 = vmatpush1.msra.mxu0 0.0
        %1857 = vmatprep.subr.mxu0 0.0
        %1858 = vmatpush1.msra.mxu0 0.0
        %1859 = vmatprep.subr.mxu0 0.0
        %1860 = vmatpush1.msra.mxu0 0.0
        %1861 = vmatprep.subr.mxu0 0.0
        %1862 = vmatpush1.msra.mxu0 0.0
        %1863 = vmatprep.subr.mxu0 0.0
        %1864 = vmatpush1.msra.mxu0 0.0
        %1865 = vmatprep.subr.mxu0 0.0
        %1866 = vmatpush1.msra.mxu0 0.0
        %1867 = vmatprep.subr.mxu0 0.0
        %1868 = vmatpush1.msra.mxu0 0.0
        %1869 = vmatprep.subr.mxu0 0.0
        %1870 = vmatpush1.msra.mxu0 0.0
        %1871 = vmatprep.mubr.f32.mxu0 0.0
        %1872 = vmatmul.mubr.f32.gmra.mrb[0].mxu0 %v1802
        %v1873 = vpop.f32.mrb[0].mxu0
        %v1874 = vadd.f32 0.0, %v1873
        %v1875 = vpop.f32.mrb[0].mxu0
        %v1876 = vadd.f32 0.0, %v1875
        %1877 = vmatprep.mubr.f32.mxu0 0.0
        %1878 = vmatmul.mubr.f32.gmra.mrb[0].mxu0 %v1805
        %v1879 = vpop.f32.mrb[0].mxu0
        %v1880 = vadd.f32 0.0, %v1879
        %v1881 = vpop.f32.mrb[0].mxu0
        %v1882 = vadd.f32 0.0, %v1881
        %1883 = vdwg.mxu0
        %v1884 = vadd.f32 %v1748, %v1874
        %v1885 = vadd.f32 %v1750, %v1876
        %v1886 = vadd.f32 %v1754, %v1880
        %v1887 = vadd.f32 %v1756, %v1882
        %1888 = vrot.lane.b32.xlu0 %v1498, 1
        %v1889 = vpop.permute.xlu0 %1888
        %1890 = vrot.lane.b32.xlu0 %v1499, 1
        %v1891 = vpop.permute.xlu0 %1890
        %1892 = vrot.lane.b32.xlu0 %v1500, 1
        %v1893 = vpop.permute.xlu0 %1892
        %1894 = vrot.lane.b32.xlu0 %v1501, 1
        %v1895 = vpop.permute.xlu0 %1894
        %1896 = vrot.lane.b32.xlu0 %v1502, 1
        %v1897 = vpop.permute.xlu0 %1896
        %1898 = vrot.lane.b32.xlu0 %v1503, 1
        %v1899 = vpop.permute.xlu0 %1898
        %1900 = vrot.lane.b32.xlu0 %v1504, 1
        %v1901 = vpop.permute.xlu0 %1900
        %1902 = vrot.lane.b32.xlu0 %v1505, 1
        %v1903 = vpop.permute.xlu0 %1902
        %v1904 = vsel %vm676, %v1889, %v1891
        %v1905 = vsel %vm676, %v1893, %v1895
        %v1906 = vsel %vm676, %v1897, %v1899
        %v1907 = vsel %vm676, %v1901, %v1903
        %v1916 = vsel %vm676, 0.0, %v1889
        %v1917 = vsel %vm676, 0.0, %v1893
        %v1918 = vsel %vm676, 0.0, %v1897
        %v1919 = vsel %vm676, 0.0, %v1901
        %s1920 = scalar_lea.vmem [#allocation5], 192
        %v1921 = vld [vmem:[%s1920] sm:$0xff]
        %v1922 = vld [vmem:[%s1920 + $0x8] sm:$0xff]
        %v1924 = vsel %vm362, %v1921, 0
        %v1927 = vsel %vm362, %v1922, 0
        %1929 = vmatprep.subr.mxu0 %v1904
        %1930 = vmatpush1.msra.mxu0 %v1916
        %1931 = vmatprep.subr.mxu0 %v1905
        %1932 = vmatpush1.msra.mxu0 %v1917
        %1933 = vmatprep.subr.mxu0 %v1906
        %1934 = vmatpush1.msra.mxu0 %v1918
        %1935 = vmatprep.subr.mxu0 %v1907
        %1936 = vmatpush1.msra.mxu0 %v1919
        %1937 = vmatprep.subr.mxu0 0.0
        %1938 = vmatpush1.msra.mxu0 0.0
        %1939 = vmatprep.subr.mxu0 0.0
        %1940 = vmatpush1.msra.mxu0 0.0
        %1941 = vmatprep.subr.mxu0 0.0
        %1942 = vmatpush1.msra.mxu0 0.0
        %1943 = vmatprep.subr.mxu0 0.0
        %1944 = vmatpush1.msra.mxu0 0.0
        %1945 = vmatprep.subr.mxu0 0.0
        %1946 = vmatpush1.msra.mxu0 0.0
        %1947 = vmatprep.subr.mxu0 0.0
        %1948 = vmatpush1.msra.mxu0 0.0
        %1949 = vmatprep.subr.mxu0 0.0
        %1950 = vmatpush1.msra.mxu0 0.0
        %1951 = vmatprep.subr.mxu0 0.0
        %1952 = vmatpush1.msra.mxu0 0.0
        %1953 = vmatprep.subr.mxu0 0.0
        %1954 = vmatpush1.msra.mxu0 0.0
        %1955 = vmatprep.subr.mxu0 0.0
        %1956 = vmatpush1.msra.mxu0 0.0
        %1957 = vmatprep.subr.mxu0 0.0
        %1958 = vmatpush1.msra.mxu0 0.0
        %1959 = vmatprep.subr.mxu0 0.0
        %1960 = vmatpush1.msra.mxu0 0.0
        %1961 = vmatprep.subr.mxu0 0.0
        %1962 = vmatpush1.msra.mxu0 0.0
        %1963 = vmatprep.subr.mxu0 0.0
        %1964 = vmatpush1.msra.mxu0 0.0
        %1965 = vmatprep.subr.mxu0 0.0
        %1966 = vmatpush1.msra.mxu0 0.0
        %1967 = vmatprep.subr.mxu0 0.0
        %1968 = vmatpush1.msra.mxu0 0.0
        %1969 = vmatprep.subr.mxu0 0.0
        %1970 = vmatpush1.msra.mxu0 0.0
        %1971 = vmatprep.subr.mxu0 0.0
        %1972 = vmatpush1.msra.mxu0 0.0
        %1973 = vmatprep.subr.mxu0 0.0
        %1974 = vmatpush1.msra.mxu0 0.0
        %1975 = vmatprep.subr.mxu0 0.0
        %1976 = vmatpush1.msra.mxu0 0.0
        %1977 = vmatprep.subr.mxu0 0.0
        %1978 = vmatpush1.msra.mxu0 0.0
        %1979 = vmatprep.subr.mxu0 0.0
        %1980 = vmatpush1.msra.mxu0 0.0
        %1981 = vmatprep.subr.mxu0 0.0
        %1982 = vmatpush1.msra.mxu0 0.0
        %1983 = vmatprep.subr.mxu0 0.0
        %1984 = vmatpush1.msra.mxu0 0.0
        %1985 = vmatprep.subr.mxu0 0.0
        %1986 = vmatpush1.msra.mxu0 0.0
        %1987 = vmatprep.subr.mxu0 0.0
        %1988 = vmatpush1.msra.mxu0 0.0
        %1989 = vmatprep.subr.mxu0 0.0
        %1990 = vmatpush1.msra.mxu0 0.0
        %1991 = vmatprep.subr.mxu0 0.0
        %1992 = vmatpush1.msra.mxu0 0.0
        %1993 = vmatprep.mubr.f32.mxu0 0.0
        %1994 = vmatmul.mubr.f32.gmra.mrb[0].mxu0 %v1924
        %v1995 = vpop.f32.mrb[0].mxu0
        %v1996 = vadd.f32 0.0, %v1995
        %v1997 = vpop.f32.mrb[0].mxu0
        %v1998 = vadd.f32 0.0, %v1997
        %1999 = vmatprep.mubr.f32.mxu0 0.0
        %2000 = vmatmul.mubr.f32.gmra.mrb[0].mxu0 %v1927
        %v2001 = vpop.f32.mrb[0].mxu0
        %v2002 = vadd.f32 0.0, %v2001
        %v2003 = vpop.f32.mrb[0].mxu0
        %v2004 = vadd.f32 0.0, %v2003
        %2005 = vdwg.mxu0
        %v2006 = vadd.f32 %v1884, %v1996
        %v2007 = vadd.f32 %v1885, %v1998
        %v2008 = vadd.f32 %v1886, %v2002
        %v2009 = vadd.f32 %v1887, %v2004
        %s2010 = scalar_lea.vmem [#allocation5], 208
        %v2011 = vld [vmem:[%s2010] sm:$0xff]
        %v2012 = vld [vmem:[%s2010 + $0x8] sm:$0xff]
        %v2014 = vsel %vm362, %v2011, 0
        %v2017 = vsel %vm362, %v2012, 0
        %2019 = vmatprep.subr.mxu0 %v1483
        %2020 = vmatpush1.msra.mxu0 %v1482
        %2021 = vmatprep.subr.mxu0 %v1485
        %2022 = vmatpush1.msra.mxu0 %v1484
        %2023 = vmatprep.subr.mxu0 %v1487
        %2024 = vmatpush1.msra.mxu0 %v1486
        %2025 = vmatprep.subr.mxu0 %v1489
        %2026 = vmatpush1.msra.mxu0 %v1488
        %2027 = vmatprep.subr.mxu0 0.0
        %2028 = vmatpush1.msra.mxu0 0.0
        %2029 = vmatprep.subr.mxu0 0.0
        %2030 = vmatpush1.msra.mxu0 0.0
        %2031 = vmatprep.subr.mxu0 0.0
        %2032 = vmatpush1.msra.mxu0 0.0
        %2033 = vmatprep.subr.mxu0 0.0
        %2034 = vmatpush1.msra.mxu0 0.0
        %2035 = vmatprep.subr.mxu0 0.0
        %2036 = vmatpush1.msra.mxu0 0.0
        %2037 = vmatprep.subr.mxu0 0.0
        %2038 = vmatpush1.msra.mxu0 0.0
        %2039 = vmatprep.subr.mxu0 0.0
        %2040 = vmatpush1.msra.mxu0 0.0
        %2041 = vmatprep.subr.mxu0 0.0
        %2042 = vmatpush1.msra.mxu0 0.0
        %2043 = vmatprep.subr.mxu0 0.0
        %2044 = vmatpush1.msra.mxu0 0.0
        %2045 = vmatprep.subr.mxu0 0.0
        %2046 = vmatpush1.msra.mxu0 0.0
        %2047 = vmatprep.subr.mxu0 0.0
        %2048 = vmatpush1.msra.mxu0 0.0
        %2049 = vmatprep.subr.mxu0 0.0
        %2050 = vmatpush1.msra.mxu0 0.0
        %2051 = vmatprep.subr.mxu0 0.0
        %2052 = vmatpush1.msra.mxu0 0.0
        %2053 = vmatprep.subr.mxu0 0.0
        %2054 = vmatpush1.msra.mxu0 0.0
        %2055 = vmatprep.subr.mxu0 0.0
        %2056 = vmatpush1.msra.mxu0 0.0
        %2057 = vmatprep.subr.mxu0 0.0
        %2058 = vmatpush1.msra.mxu0 0.0
        %2059 = vmatprep.subr.mxu0 0.0
        %2060 = vmatpush1.msra.mxu0 0.0
        %2061 = vmatprep.subr.mxu0 0.0
        %2062 = vmatpush1.msra.mxu0 0.0
        %2063 = vmatprep.subr.mxu0 0.0
        %2064 = vmatpush1.msra.mxu0 0.0
        %2065 = vmatprep.subr.mxu0 0.0
        %2066 = vmatpush1.msra.mxu0 0.0
        %2067 = vmatprep.subr.mxu0 0.0
        %2068 = vmatpush1.msra.mxu0 0.0
        %2069 = vmatprep.subr.mxu0 0.0
        %2070 = vmatpush1.msra.mxu0 0.0
        %2071 = vmatprep.subr.mxu0 0.0
        %2072 = vmatpush1.msra.mxu0 0.0
        %2073 = vmatprep.subr.mxu0 0.0
        %2074 = vmatpush1.msra.mxu0 0.0
        %2075 = vmatprep.subr.mxu0 0.0
        %2076 = vmatpush1.msra.mxu0 0.0
        %2077 = vmatprep.subr.mxu0 0.0
        %2078 = vmatpush1.msra.mxu0 0.0
        %2079 = vmatprep.subr.mxu0 0.0
        %2080 = vmatpush1.msra.mxu0 0.0
        %2081 = vmatprep.subr.mxu0 0.0
        %2082 = vmatpush1.msra.mxu0 0.0
        %2083 = vmatprep.mubr.f32.mxu0 0.0
        %2084 = vmatmul.mubr.f32.gmra.mrb[0].mxu0 %v2014
        %v2085 = vpop.f32.mrb[0].mxu0
        %v2086 = vadd.f32 0.0, %v2085
        %v2087 = vpop.f32.mrb[0].mxu0
        %v2088 = vadd.f32 0.0, %v2087
        %2089 = vmatprep.mubr.f32.mxu0 0.0
        %2090 = vmatmul.mubr.f32.gmra.mrb[0].mxu0 %v2017
        %v2091 = vpop.f32.mrb[0].mxu0
        %v2092 = vadd.f32 0.0, %v2091
        %v2093 = vpop.f32.mrb[0].mxu0
        %v2094 = vadd.f32 0.0, %v2093
        %2095 = vdwg.mxu0
        %v2096 = vadd.f32 %v2006, %v2086
        %v2097 = vadd.f32 %v2007, %v2088
        %v2098 = vadd.f32 %v2008, %v2092
        %v2099 = vadd.f32 %v2009, %v2094
        %2100 = vrot.lane.b32.xlu0 %v1490, 127
        %v2101 = vpop.permute.xlu0 %2100
        %2102 = vrot.lane.b32.xlu0 %v1491, 127
        %v2103 = vpop.permute.xlu0 %2102
        %2104 = vrot.lane.b32.xlu0 %v1492, 127
        %v2105 = vpop.permute.xlu0 %2104
        %2106 = vrot.lane.b32.xlu0 %v1493, 127
        %v2107 = vpop.permute.xlu0 %2106
        %2108 = vrot.lane.b32.xlu0 %v1494, 127
        %v2109 = vpop.permute.xlu0 %2108
        %2110 = vrot.lane.b32.xlu0 %v1495, 127
        %v2111 = vpop.permute.xlu0 %2110
        %2112 = vrot.lane.b32.xlu0 %v1496, 127
        %v2113 = vpop.permute.xlu0 %2112
        %2114 = vrot.lane.b32.xlu0 %v1497, 127
        %v2115 = vpop.permute.xlu0 %2114
        %v2116 = vsel %vm889, %v2101, %v2103
        %v2117 = vsel %vm889, %v2105, %v2107
        %v2118 = vsel %vm889, %v2109, %v2111
        %v2119 = vsel %vm889, %v2113, %v2115
        %v2128 = vsel %vm889, %v2103, 0.0
        %v2129 = vsel %vm889, %v2107, 0.0
        %v2130 = vsel %vm889, %v2111, 0.0
        %v2131 = vsel %vm889, %v2115, 0.0
        %s2132 = scalar_lea.vmem [#allocation5], 224
        %v2133 = vld [vmem:[%s2132] sm:$0xff]
        %v2134 = vld [vmem:[%s2132 + $0x8] sm:$0xff]
        %v2136 = vsel %vm362, %v2133, 0
        %v2139 = vsel %vm362, %v2134, 0
        %2141 = vmatprep.subr.mxu0 %v2128
        %2142 = vmatpush1.msra.mxu0 %v2116
        %2143 = vmatprep.subr.mxu0 %v2129
        %2144 = vmatpush1.msra.mxu0 %v2117
        %2145 = vmatprep.subr.mxu0 %v2130
        %2146 = vmatpush1.msra.mxu0 %v2118
        %2147 = vmatprep.subr.mxu0 %v2131
        %2148 = vmatpush1.msra.mxu0 %v2119
        %2149 = vmatprep.subr.mxu0 0.0
        %2150 = vmatpush1.msra.mxu0 0.0
        %2151 = vmatprep.subr.mxu0 0.0
        %2152 = vmatpush1.msra.mxu0 0.0
        %2153 = vmatprep.subr.mxu0 0.0
        %2154 = vmatpush1.msra.mxu0 0.0
        %2155 = vmatprep.subr.mxu0 0.0
        %2156 = vmatpush1.msra.mxu0 0.0
        %2157 = vmatprep.subr.mxu0 0.0
        %2158 = vmatpush1.msra.mxu0 0.0
        %2159 = vmatprep.subr.mxu0 0.0
        %2160 = vmatpush1.msra.mxu0 0.0
        %2161 = vmatprep.subr.mxu0 0.0
        %2162 = vmatpush1.msra.mxu0 0.0
        %2163 = vmatprep.subr.mxu0 0.0
        %2164 = vmatpush1.msra.mxu0 0.0
        %2165 = vmatprep.subr.mxu0 0.0
        %2166 = vmatpush1.msra.mxu0 0.0
        %2167 = vmatprep.subr.mxu0 0.0
        %2168 = vmatpush1.msra.mxu0 0.0
        %2169 = vmatprep.subr.mxu0 0.0
        %2170 = vmatpush1.msra.mxu0 0.0
        %2171 = vmatprep.subr.mxu0 0.0
        %2172 = vmatpush1.msra.mxu0 0.0
        %2173 = vmatprep.subr.mxu0 0.0
        %2174 = vmatpush1.msra.mxu0 0.0
        %2175 = vmatprep.subr.mxu0 0.0
        %2176 = vmatpush1.msra.mxu0 0.0
        %2177 = vmatprep.subr.mxu0 0.0
        %2178 = vmatpush1.msra.mxu0 0.0
        %2179 = vmatprep.subr.mxu0 0.0
        %2180 = vmatpush1.msra.mxu0 0.0
        %2181 = vmatprep.subr.mxu0 0.0
        %2182 = vmatpush1.msra.mxu0 0.0
        %2183 = vmatprep.subr.mxu0 0.0
        %2184 = vmatpush1.msra.mxu0 0.0
        %2185 = vmatprep.subr.mxu0 0.0
        %2186 = vmatpush1.msra.mxu0 0.0
        %2187 = vmatprep.subr.mxu0 0.0
        %2188 = vmatpush1.msra.mxu0 0.0
        %2189 = vmatprep.subr.mxu0 0.0
        %2190 = vmatpush1.msra.mxu0 0.0
        %2191 = vmatprep.subr.mxu0 0.0
        %2192 = vmatpush1.msra.mxu0 0.0
        %2193 = vmatprep.subr.mxu0 0.0
        %2194 = vmatpush1.msra.mxu0 0.0
        %2195 = vmatprep.subr.mxu0 0.0
        %2196 = vmatpush1.msra.mxu0 0.0
        %2197 = vmatprep.subr.mxu0 0.0
        %2198 = vmatpush1.msra.mxu0 0.0
        %2199 = vmatprep.subr.mxu0 0.0
        %2200 = vmatpush1.msra.mxu0 0.0
        %2201 = vmatprep.subr.mxu0 0.0
        %2202 = vmatpush1.msra.mxu0 0.0
        %2203 = vmatprep.subr.mxu0 0.0
        %2204 = vmatpush1.msra.mxu0 0.0
        %2205 = vmatprep.mubr.f32.mxu0 0.0
        %2206 = vmatmul.mubr.f32.gmra.mrb[0].mxu0 %v2136
        %v2207 = vpop.f32.mrb[0].mxu0
        %v2208 = vadd.f32 0.0, %v2207
        %v2209 = vpop.f32.mrb[0].mxu0
        %v2210 = vadd.f32 0.0, %v2209
        %2211 = vmatprep.mubr.f32.mxu0 0.0
        %2212 = vmatmul.mubr.f32.gmra.mrb[0].mxu0 %v2139
        %v2213 = vpop.f32.mrb[0].mxu0
        %v2214 = vadd.f32 0.0, %v2213
        %v2215 = vpop.f32.mrb[0].mxu0
        %v2216 = vadd.f32 0.0, %v2215
        %2217 = vdwg.mxu0
        %v2218 = vadd.f32 %v2096, %v2208
        %v2219 = vadd.f32 %v2097, %v2210
        %v2220 = vadd.f32 %v2098, %v2214
        %v2221 = vadd.f32 %v2099, %v2216
        %2222 = vrot.lane.b32.xlu0 %v1498, 113
        %v2223 = vpop.permute.xlu0 %2222
        %2224 = vrot.lane.b32.xlu0 %v1499, 113
        %v2225 = vpop.permute.xlu0 %2224
        %2226 = vrot.lane.b32.xlu0 %v1500, 113
        %v2227 = vpop.permute.xlu0 %2226
        %2228 = vrot.lane.b32.xlu0 %v1501, 113
        %v2229 = vpop.permute.xlu0 %2228
        %2230 = vrot.lane.b32.xlu0 %v1502, 113
        %v2231 = vpop.permute.xlu0 %2230
        %2232 = vrot.lane.b32.xlu0 %v1503, 113
        %v2233 = vpop.permute.xlu0 %2232
        %2234 = vrot.lane.b32.xlu0 %v1504, 113
        %v2235 = vpop.permute.xlu0 %2234
        %2236 = vrot.lane.b32.xlu0 %v1505, 113
        %v2237 = vpop.permute.xlu0 %2236
        %v2238 = vsel %vm1012, %v2223, %v2225
        %v2239 = vsel %vm1012, %v2227, %v2229
        %v2240 = vsel %vm1012, %v2231, %v2233
        %v2241 = vsel %vm1012, %v2235, %v2237
        %v2250 = vsel %vm1012, %v2225, 0.0
        %v2251 = vsel %vm1012, %v2229, 0.0
        %v2252 = vsel %vm1012, %v2233, 0.0
        %v2253 = vsel %vm1012, %v2237, 0.0
        %s2254 = scalar_lea.vmem [#allocation5], 240
        %v2255 = vld [vmem:[%s2254] sm:$0xff]
        %v2256 = vld [vmem:[%s2254 + $0x8] sm:$0xff]
        %v2258 = vsel %vm362, %v2255, 0
        %v2261 = vsel %vm362, %v2256, 0
        %2263 = vmatprep.subr.mxu0 %v2250
        %2264 = vmatpush1.msra.mxu0 %v2238
        %2265 = vmatprep.subr.mxu0 %v2251
        %2266 = vmatpush1.msra.mxu0 %v2239
        %2267 = vmatprep.subr.mxu0 %v2252
        %2268 = vmatpush1.msra.mxu0 %v2240
        %2269 = vmatprep.subr.mxu0 %v2253
        %2270 = vmatpush1.msra.mxu0 %v2241
        %2271 = vmatprep.subr.mxu0 0.0
        %2272 = vmatpush1.msra.mxu0 0.0
        %2273 = vmatprep.subr.mxu0 0.0
        %2274 = vmatpush1.msra.mxu0 0.0
        %2275 = vmatprep.subr.mxu0 0.0
        %2276 = vmatpush1.msra.mxu0 0.0
        %2277 = vmatprep.subr.mxu0 0.0
        %2278 = vmatpush1.msra.mxu0 0.0
        %2279 = vmatprep.subr.mxu0 0.0
        %2280 = vmatpush1.msra.mxu0 0.0
        %2281 = vmatprep.subr.mxu0 0.0
        %2282 = vmatpush1.msra.mxu0 0.0
        %2283 = vmatprep.subr.mxu0 0.0
        %2284 = vmatpush1.msra.mxu0 0.0
        %2285 = vmatprep.subr.mxu0 0.0
        %2286 = vmatpush1.msra.mxu0 0.0
        %2287 = vmatprep.subr.mxu0 0.0
        %2288 = vmatpush1.msra.mxu0 0.0
        %2289 = vmatprep.subr.mxu0 0.0
        %2290 = vmatpush1.msra.mxu0 0.0
        %2291 = vmatprep.subr.mxu0 0.0
        %2292 = vmatpush1.msra.mxu0 0.0
        %2293 = vmatprep.subr.mxu0 0.0
        %2294 = vmatpush1.msra.mxu0 0.0
        %2295 = vmatprep.subr.mxu0 0.0
        %2296 = vmatpush1.msra.mxu0 0.0
        %2297 = vmatprep.subr.mxu0 0.0
        %2298 = vmatpush1.msra.mxu0 0.0
        %2299 = vmatprep.subr.mxu0 0.0
        %2300 = vmatpush1.msra.mxu0 0.0
        %2301 = vmatprep.subr.mxu0 0.0
        %2302 = vmatpush1.msra.mxu0 0.0
        %2303 = vmatprep.subr.mxu0 0.0
        %2304 = vmatpush1.msra.mxu0 0.0
        %2305 = vmatprep.subr.mxu0 0.0
        %2306 = vmatpush1.msra.mxu0 0.0
        %2307 = vmatprep.subr.mxu0 0.0
        %2308 = vmatpush1.msra.mxu0 0.0
        %2309 = vmatprep.subr.mxu0 0.0
        %2310 = vmatpush1.msra.mxu0 0.0
        %2311 = vmatprep.subr.mxu0 0.0
        %2312 = vmatpush1.msra.mxu0 0.0
        %2313 = vmatprep.subr.mxu0 0.0
        %2314 = vmatpush1.msra.mxu0 0.0
        %2315 = vmatprep.subr.mxu0 0.0
        %2316 = vmatpush1.msra.mxu0 0.0
        %2317 = vmatprep.subr.mxu0 0.0
        %2318 = vmatpush1.msra.mxu0 0.0
        %2319 = vmatprep.subr.mxu0 0.0
        %2320 = vmatpush1.msra.mxu0 0.0
        %2321 = vmatprep.subr.mxu0 0.0
        %2322 = vmatpush1.msra.mxu0 0.0
        %2323 = vmatprep.subr.mxu0 0.0
        %2324 = vmatpush1.msra.mxu0 0.0
        %2325 = vmatprep.subr.mxu0 0.0
        %2326 = vmatpush1.msra.mxu0 0.0
        %2327 = vmatprep.mubr.f32.mxu0 0.0
        %2328 = vmatmul.mubr.f32.gmra.mrb[0].mxu0 %v2258
        %v2329 = vpop.f32.mrb[0].mxu0
        %v2330 = vadd.f32 0.0, %v2329
        %v2331 = vpop.f32.mrb[0].mxu0
        %v2332 = vadd.f32 0.0, %v2331
        %2333 = vmatprep.mubr.f32.mxu0 0.0
        %2334 = vmatmul.mubr.f32.gmra.mrb[0].mxu0 %v2261
        %v2335 = vpop.f32.mrb[0].mxu0
        %v2336 = vadd.f32 0.0, %v2335
        %v2337 = vpop.f32.mrb[0].mxu0
        %v2338 = vadd.f32 0.0, %v2337
        %2339 = vdwg.mxu0
        %v2340 = vadd.f32 %v2218, %v2330
        %v2341 = vadd.f32 %v2219, %v2332
        %v2342 = vadd.f32 %v2220, %v2336
        %v2343 = vadd.f32 %v2221, %v2338
        %2344 = vrot.lane.b32.xlu0 %v1482, 112
        %v2345 = vpop.permute.xlu0 %2344
        %2346 = vrot.lane.b32.xlu0 %v1483, 112
        %v2347 = vpop.permute.xlu0 %2346
        %2348 = vrot.lane.b32.xlu0 %v1484, 112
        %v2349 = vpop.permute.xlu0 %2348
        %2350 = vrot.lane.b32.xlu0 %v1485, 112
        %v2351 = vpop.permute.xlu0 %2350
        %2352 = vrot.lane.b32.xlu0 %v1486, 112
        %v2353 = vpop.permute.xlu0 %2352
        %2354 = vrot.lane.b32.xlu0 %v1487, 112
        %v2355 = vpop.permute.xlu0 %2354
        %2356 = vrot.lane.b32.xlu0 %v1488, 112
        %v2357 = vpop.permute.xlu0 %2356
        %2358 = vrot.lane.b32.xlu0 %v1489, 112
        %v2359 = vpop.permute.xlu0 %2358
        %v2360 = vsel %vm1135, %v2345, %v2347
        %v2361 = vsel %vm1135, %v2349, %v2351
        %v2362 = vsel %vm1135, %v2353, %v2355
        %v2363 = vsel %vm1135, %v2357, %v2359
        %v2372 = vsel %vm1135, %v2347, 0.0
        %v2373 = vsel %vm1135, %v2351, 0.0
        %v2374 = vsel %vm1135, %v2355, 0.0
        %v2375 = vsel %vm1135, %v2359, 0.0
        %s2376 = scalar_lea.vmem [#allocation5], 256
        %v2377 = vld [vmem:[%s2376] sm:$0xff]
        %v2378 = vld [vmem:[%s2376 + $0x8] sm:$0xff]
        %v2380 = vsel %vm362, %v2377, 0
        %v2383 = vsel %vm362, %v2378, 0
        %2385 = vmatprep.subr.mxu0 %v2372
        %2386 = vmatpush1.msra.mxu0 %v2360
        %2387 = vmatprep.subr.mxu0 %v2373
        %2388 = vmatpush1.msra.mxu0 %v2361
        %2389 = vmatprep.subr.mxu0 %v2374
        %2390 = vmatpush1.msra.mxu0 %v2362
        %2391 = vmatprep.subr.mxu0 %v2375
        %2392 = vmatpush1.msra.mxu0 %v2363
        %2393 = vmatprep.subr.mxu0 0.0
        %2394 = vmatpush1.msra.mxu0 0.0
        %2395 = vmatprep.subr.mxu0 0.0
        %2396 = vmatpush1.msra.mxu0 0.0
        %2397 = vmatprep.subr.mxu0 0.0
        %2398 = vmatpush1.msra.mxu0 0.0
        %2399 = vmatprep.subr.mxu0 0.0
        %2400 = vmatpush1.msra.mxu0 0.0
        %2401 = vmatprep.subr.mxu0 0.0
        %2402 = vmatpush1.msra.mxu0 0.0
        %2403 = vmatprep.subr.mxu0 0.0
        %2404 = vmatpush1.msra.mxu0 0.0
        %2405 = vmatprep.subr.mxu0 0.0
        %2406 = vmatpush1.msra.mxu0 0.0
        %2407 = vmatprep.subr.mxu0 0.0
        %2408 = vmatpush1.msra.mxu0 0.0
        %2409 = vmatprep.subr.mxu0 0.0
        %2410 = vmatpush1.msra.mxu0 0.0
        %2411 = vmatprep.subr.mxu0 0.0
        %2412 = vmatpush1.msra.mxu0 0.0
        %2413 = vmatprep.subr.mxu0 0.0
        %2414 = vmatpush1.msra.mxu0 0.0
        %2415 = vmatprep.subr.mxu0 0.0
        %2416 = vmatpush1.msra.mxu0 0.0
        %2417 = vmatprep.subr.mxu0 0.0
        %2418 = vmatpush1.msra.mxu0 0.0
        %2419 = vmatprep.subr.mxu0 0.0
        %2420 = vmatpush1.msra.mxu0 0.0
        %2421 = vmatprep.subr.mxu0 0.0
        %2422 = vmatpush1.msra.mxu0 0.0
        %2423 = vmatprep.subr.mxu0 0.0
        %2424 = vmatpush1.msra.mxu0 0.0
        %2425 = vmatprep.subr.mxu0 0.0
        %2426 = vmatpush1.msra.mxu0 0.0
        %2427 = vmatprep.subr.mxu0 0.0
        %2428 = vmatpush1.msra.mxu0 0.0
        %2429 = vmatprep.subr.mxu0 0.0
        %2430 = vmatpush1.msra.mxu0 0.0
        %2431 = vmatprep.subr.mxu0 0.0
        %2432 = vmatpush1.msra.mxu0 0.0
        %2433 = vmatprep.subr.mxu0 0.0
        %2434 = vmatpush1.msra.mxu0 0.0
        %2435 = vmatprep.subr.mxu0 0.0
        %2436 = vmatpush1.msra.mxu0 0.0
        %2437 = vmatprep.subr.mxu0 0.0
        %2438 = vmatpush1.msra.mxu0 0.0
        %2439 = vmatprep.subr.mxu0 0.0
        %2440 = vmatpush1.msra.mxu0 0.0
        %2441 = vmatprep.subr.mxu0 0.0
        %2442 = vmatpush1.msra.mxu0 0.0
        %2443 = vmatprep.subr.mxu0 0.0
        %2444 = vmatpush1.msra.mxu0 0.0
        %2445 = vmatprep.subr.mxu0 0.0
        %2446 = vmatpush1.msra.mxu0 0.0
        %2447 = vmatprep.subr.mxu0 0.0
        %2448 = vmatpush1.msra.mxu0 0.0
        %2449 = vmatprep.mubr.f32.mxu0 0.0
        %2450 = vmatmul.mubr.f32.gmra.mrb[0].mxu0 %v2380
        %v2451 = vpop.f32.mrb[0].mxu0
        %v2452 = vadd.f32 0.0, %v2451
        %v2453 = vpop.f32.mrb[0].mxu0
        %v2454 = vadd.f32 0.0, %v2453
        %2455 = vmatprep.mubr.f32.mxu0 0.0
        %2456 = vmatmul.mubr.f32.gmra.mrb[0].mxu0 %v2383
        %v2457 = vpop.f32.mrb[0].mxu0
        %v2458 = vadd.f32 0.0, %v2457
        %v2459 = vpop.f32.mrb[0].mxu0
        %v2460 = vadd.f32 0.0, %v2459
        %2461 = vdwg.mxu0
        %v2462 = vadd.f32 %v2340, %v2452
        %v2463 = vadd.f32 %v2341, %v2454
        %v2464 = vadd.f32 %v2342, %v2458
        %v2465 = vadd.f32 %v2343, %v2460
        %2466 = vrot.lane.b32.xlu0 %v1490, 111
        %v2467 = vpop.permute.xlu0 %2466
        %2468 = vrot.lane.b32.xlu0 %v1491, 111
        %v2469 = vpop.permute.xlu0 %2468
        %2470 = vrot.lane.b32.xlu0 %v1492, 111
        %v2471 = vpop.permute.xlu0 %2470
        %2472 = vrot.lane.b32.xlu0 %v1493, 111
        %v2473 = vpop.permute.xlu0 %2472
        %2474 = vrot.lane.b32.xlu0 %v1494, 111
        %v2475 = vpop.permute.xlu0 %2474
        %2476 = vrot.lane.b32.xlu0 %v1495, 111
        %v2477 = vpop.permute.xlu0 %2476
        %2478 = vrot.lane.b32.xlu0 %v1496, 111
        %v2479 = vpop.permute.xlu0 %2478
        %2480 = vrot.lane.b32.xlu0 %v1497, 111
        %v2481 = vpop.permute.xlu0 %2480
        %v2482 = vsel %vm1258, %v2467, %v2469
        %v2483 = vsel %vm1258, %v2471, %v2473
        %v2484 = vsel %vm1258, %v2475, %v2477
        %v2485 = vsel %vm1258, %v2479, %v2481
        %v2494 = vsel %vm1258, %v2469, 0.0
        %v2495 = vsel %vm1258, %v2473, 0.0
        %v2496 = vsel %vm1258, %v2477, 0.0
        %v2497 = vsel %vm1258, %v2481, 0.0
        %s2498 = scalar_lea.vmem [#allocation5], 272
        %v2499 = vld [vmem:[%s2498] sm:$0xff]
        %v2500 = vld [vmem:[%s2498 + $0x8] sm:$0xff]
        %v2502 = vsel %vm362, %v2499, 0
        %v2505 = vsel %vm362, %v2500, 0
        %2507 = vmatprep.subr.mxu0 %v2494
        %2508 = vmatpush1.msra.mxu0 %v2482
        %2509 = vmatprep.subr.mxu0 %v2495
        %2510 = vmatpush1.msra.mxu0 %v2483
        %2511 = vmatprep.subr.mxu0 %v2496
        %2512 = vmatpush1.msra.mxu0 %v2484
        %2513 = vmatprep.subr.mxu0 %v2497
        %2514 = vmatpush1.msra.mxu0 %v2485
        %2515 = vmatprep.subr.mxu0 0.0
        %2516 = vmatpush1.msra.mxu0 0.0
        %2517 = vmatprep.subr.mxu0 0.0
        %2518 = vmatpush1.msra.mxu0 0.0
        %2519 = vmatprep.subr.mxu0 0.0
        %2520 = vmatpush1.msra.mxu0 0.0
        %2521 = vmatprep.subr.mxu0 0.0
        %2522 = vmatpush1.msra.mxu0 0.0
        %2523 = vmatprep.subr.mxu0 0.0
        %2524 = vmatpush1.msra.mxu0 0.0
        %2525 = vmatprep.subr.mxu0 0.0
        %2526 = vmatpush1.msra.mxu0 0.0
        %2527 = vmatprep.subr.mxu0 0.0
        %2528 = vmatpush1.msra.mxu0 0.0
        %2529 = vmatprep.subr.mxu0 0.0
        %2530 = vmatpush1.msra.mxu0 0.0
        %2531 = vmatprep.subr.mxu0 0.0
        %2532 = vmatpush1.msra.mxu0 0.0
        %2533 = vmatprep.subr.mxu0 0.0
        %2534 = vmatpush1.msra.mxu0 0.0
        %2535 = vmatprep.subr.mxu0 0.0
        %2536 = vmatpush1.msra.mxu0 0.0
        %2537 = vmatprep.subr.mxu0 0.0
        %2538 = vmatpush1.msra.mxu0 0.0
        %2539 = vmatprep.subr.mxu0 0.0
        %2540 = vmatpush1.msra.mxu0 0.0
        %2541 = vmatprep.subr.mxu0 0.0
        %2542 = vmatpush1.msra.mxu0 0.0
        %2543 = vmatprep.subr.mxu0 0.0
        %2544 = vmatpush1.msra.mxu0 0.0
        %2545 = vmatprep.subr.mxu0 0.0
        %2546 = vmatpush1.msra.mxu0 0.0
        %2547 = vmatprep.subr.mxu0 0.0
        %2548 = vmatpush1.msra.mxu0 0.0
        %2549 = vmatprep.subr.mxu0 0.0
        %2550 = vmatpush1.msra.mxu0 0.0
        %2551 = vmatprep.subr.mxu0 0.0
        %2552 = vmatpush1.msra.mxu0 0.0
        %2553 = vmatprep.subr.mxu0 0.0
        %2554 = vmatpush1.msra.mxu0 0.0
        %2555 = vmatprep.subr.mxu0 0.0
        %2556 = vmatpush1.msra.mxu0 0.0
        %2557 = vmatprep.subr.mxu0 0.0
        %2558 = vmatpush1.msra.mxu0 0.0
        %2559 = vmatprep.subr.mxu0 0.0
        %2560 = vmatpush1.msra.mxu0 0.0
        %2561 = vmatprep.subr.mxu0 0.0
        %2562 = vmatpush1.msra.mxu0 0.0
        %2563 = vmatprep.subr.mxu0 0.0
        %2564 = vmatpush1.msra.mxu0 0.0
        %2565 = vmatprep.subr.mxu0 0.0
        %2566 = vmatpush1.msra.mxu0 0.0
        %2567 = vmatprep.subr.mxu0 0.0
        %2568 = vmatpush1.msra.mxu0 0.0
        %2569 = vmatprep.subr.mxu0 0.0
        %2570 = vmatpush1.msra.mxu0 0.0
        %2571 = vmatprep.mubr.f32.mxu0 0.0
        %2572 = vmatmul.mubr.f32.gmra.mrb[0].mxu0 %v2502
        %v2573 = vpop.f32.mrb[0].mxu0
        %v2574 = vadd.f32 0.0, %v2573
        %v2575 = vpop.f32.mrb[0].mxu0
        %v2576 = vadd.f32 0.0, %v2575
        %2577 = vmatprep.mubr.f32.mxu0 0.0
        %2578 = vmatmul.mubr.f32.gmra.mrb[0].mxu0 %v2505
        %v2579 = vpop.f32.mrb[0].mxu0
        %v2580 = vadd.f32 0.0, %v2579
        %v2581 = vpop.f32.mrb[0].mxu0
        %v2582 = vadd.f32 0.0, %v2581
        %2583 = vdwg.mxu0
        %v2584 = vadd.f32 %v2462, %v2574
        %v2585 = vadd.f32 %v2463, %v2576
        %v2586 = vadd.f32 %v2464, %v2580
        %v2587 = vadd.f32 %v2465, %v2582
        %v2588 = vmax.f32 %v2584, 0.0
        %v2589 = vmax.f32 %v2585, 0.0
        %v2590 = vmax.f32 %v2586, 0.0
        %v2591 = vmax.f32 %v2587, 0.0
        %s2592 = scalar_lea.vmem %s2, 32
        %v2593 = vld [vmem:[%s2592] sm:$0xff]
        %v2594 = vld [vmem:[%s2592 + $0x8] sm:$0xff]
        %v2595 = vld [vmem:[%s2592 + $0x10] sm:$0xff]
        %v2596 = vld [vmem:[%s2592 + $0x18] sm:$0xff]
        %v2598 = vsel %vm342, %v2593, 0
        %v2601 = vsel %vm342, %v2594, 0
        %v2604 = vsel %vm342, %v2595, 0
        %v2607 = vsel %vm342, %v2596, 0
        %2609 = vmatprep.subr.mxu0 %v2589
        %2610 = vmatpush1.msra.mxu0 %v2588
        %2611 = vmatprep.subr.mxu0 %v2591
        %2612 = vmatpush1.msra.mxu0 %v2590
        %2613 = vmatprep.subr.mxu0 0.0
        %2614 = vmatpush1.msra.mxu0 0.0
        %2615 = vmatprep.subr.mxu0 0.0
        %2616 = vmatpush1.msra.mxu0 0.0
        %2617 = vmatprep.subr.mxu0 0.0
        %2618 = vmatpush1.msra.mxu0 0.0
        %2619 = vmatprep.subr.mxu0 0.0
        %2620 = vmatpush1.msra.mxu0 0.0
        %2621 = vmatprep.subr.mxu0 0.0
        %2622 = vmatpush1.msra.mxu0 0.0
        %2623 = vmatprep.subr.mxu0 0.0
        %2624 = vmatpush1.msra.mxu0 0.0
        %2625 = vmatprep.subr.mxu0 0.0
        %2626 = vmatpush1.msra.mxu0 0.0
        %2627 = vmatprep.subr.mxu0 0.0
        %2628 = vmatpush1.msra.mxu0 0.0
        %2629 = vmatprep.subr.mxu0 0.0
        %2630 = vmatpush1.msra.mxu0 0.0
        %2631 = vmatprep.subr.mxu0 0.0
        %2632 = vmatpush1.msra.mxu0 0.0
        %2633 = vmatprep.subr.mxu0 0.0
        %2634 = vmatpush1.msra.mxu0 0.0
        %2635 = vmatprep.subr.mxu0 0.0
        %2636 = vmatpush1.msra.mxu0 0.0
        %2637 = vmatprep.subr.mxu0 0.0
        %2638 = vmatpush1.msra.mxu0 0.0
        %2639 = vmatprep.subr.mxu0 0.0
        %2640 = vmatpush1.msra.mxu0 0.0
        %2641 = vmatprep.subr.mxu0 0.0
        %2642 = vmatpush1.msra.mxu0 0.0
        %2643 = vmatprep.subr.mxu0 0.0
        %2644 = vmatpush1.msra.mxu0 0.0
        %2645 = vmatprep.subr.mxu0 0.0
        %2646 = vmatpush1.msra.mxu0 0.0
        %2647 = vmatprep.subr.mxu0 0.0
        %2648 = vmatpush1.msra.mxu0 0.0
        %2649 = vmatprep.subr.mxu0 0.0
        %2650 = vmatpush1.msra.mxu0 0.0
        %2651 = vmatprep.subr.mxu0 0.0
        %2652 = vmatpush1.msra.mxu0 0.0
        %2653 = vmatprep.subr.mxu0 0.0
        %2654 = vmatpush1.msra.mxu0 0.0
        %2655 = vmatprep.subr.mxu0 0.0
        %2656 = vmatpush1.msra.mxu0 0.0
        %2657 = vmatprep.subr.mxu0 0.0
        %2658 = vmatpush1.msra.mxu0 0.0
        %2659 = vmatprep.subr.mxu0 0.0
        %2660 = vmatpush1.msra.mxu0 0.0
        %2661 = vmatprep.subr.mxu0 0.0
        %2662 = vmatpush1.msra.mxu0 0.0
        %2663 = vmatprep.subr.mxu0 0.0
        %2664 = vmatpush1.msra.mxu0 0.0
        %2665 = vmatprep.subr.mxu0 0.0
        %2666 = vmatpush1.msra.mxu0 0.0
        %2667 = vmatprep.subr.mxu0 0.0
        %2668 = vmatpush1.msra.mxu0 0.0
        %2669 = vmatprep.subr.mxu0 0.0
        %2670 = vmatpush1.msra.mxu0 0.0
        %2671 = vmatprep.subr.mxu0 0.0
        %2672 = vmatpush1.msra.mxu0 0.0
        %2673 = vmatprep.mubr.f32.mxu0 0.0
        %2674 = vmatmul.mubr.f32.gmra.mrb[0].mxu0 %v2598
        %v2675 = vpop.f32.mrb[0].mxu0
        %v2676 = vadd.f32 0.0, %v2675
        %v2677 = vpop.f32.mrb[0].mxu0
        %v2678 = vadd.f32 0.0, %v2677
        %2679 = vmatprep.mubr.f32.mxu0 0.0
        %2680 = vmatmul.mubr.f32.gmra.mrb[0].mxu0 %v2601
        %v2681 = vpop.f32.mrb[0].mxu0
        %v2682 = vadd.f32 0.0, %v2681
        %v2683 = vpop.f32.mrb[0].mxu0
        %v2684 = vadd.f32 0.0, %v2683
        %2685 = vmatprep.mubr.f32.mxu0 0.0
        %2686 = vmatmul.mubr.f32.gmra.mrb[0].mxu0 %v2604
        %v2687 = vpop.f32.mrb[0].mxu0
        %v2688 = vadd.f32 0.0, %v2687
        %v2689 = vpop.f32.mrb[0].mxu0
        %v2690 = vadd.f32 0.0, %v2689
        %2691 = vmatprep.mubr.f32.mxu0 0.0
        %2692 = vmatmul.mubr.f32.gmra.mrb[0].mxu0 %v2607
        %v2693 = vpop.f32.mrb[0].mxu0
        %v2694 = vadd.f32 0.0, %v2693
        %v2695 = vpop.f32.mrb[0].mxu0
        %v2696 = vadd.f32 0.0, %v2695
        %2697 = vdwg.mxu0
        %v2698 = vadd.f32 %v1474, %v2676
        %v2699 = vadd.f32 %v1475, %v2678
        %v2700 = vadd.f32 %v1476, %v2682
        %v2701 = vadd.f32 %v1477, %v2684
        %v2702 = vadd.f32 %v1478, %v2688
        %v2703 = vadd.f32 %v1479, %v2690
        %v2704 = vadd.f32 %v1480, %v2694
        %v2705 = vadd.f32 %v1481, %v2696
        %v2706 = vmax.f32 %v2698, 0.0
        %v2707 = vmax.f32 %v2699, 0.0
        %v2708 = vmax.f32 %v2700, 0.0
        %v2709 = vmax.f32 %v2701, 0.0
        %v2710 = vmax.f32 %v2702, 0.0
        %v2711 = vmax.f32 %v2703, 0.0
        %v2712 = vmax.f32 %v2704, 0.0
        %v2713 = vmax.f32 %v2705, 0.0
        %2714 = vst [vmem:[%s203] sm:$0xff] %v2706
        %2715 = vst [vmem:[%s203 + $0x8] sm:$0xff] %v2707
        %2716 = vst [vmem:[%s203 + $0x10] sm:$0xff] %v2708
        %2717 = vst [vmem:[%s203 + $0x18] sm:$0xff] %v2709
        %2718 = vst [vmem:[%s203 + $0x20] sm:$0xff] %v2710
        %2719 = vst [vmem:[%s203 + $0x28] sm:$0xff] %v2711
        %2720 = vst [vmem:[%s203 + $0x30] sm:$0xff] %v2712
        %2721 = vst [vmem:[%s203 + $0x38] sm:$0xff] %v2713
        %s2722 = sand.u32 %s97, 1
        %s2723 = scalar_lea.sflag [#allocation4], %s2722
        %s2724 = sand.u32 %s97, 1
        %s2725 = smul.addr %s2724, 64
        %s2726 = scalar_lea.vmem [#allocation7], %s2725
        // Predicated region
        $region41: #{tpu_custom_call.1} parent=31 // pred_check
          %p2727 = pneg %p107
        $region42: #{tpu_custom_call.1} parent=31 // pred_check_branch
          %2729 = sbr.rel (%p2727) target = $region44
        $region43: #{tpu_custom_call.1} parent=31 // pred_region
          %s2731 = ssub.s32 1024, 1024
          %2732 = vsyncadd %s2723, %s2731
          %s2733 = smul.addr %s21, 8
          %s2734 = smul.addr %s2733, 128
          %s2735 = scalar_lea.hbm %s3, %s2734
          %s2736 = sshll.u32 %s2726, 4
          %s2737 = int_to_ptr.vmem [resolvable:$true] %s2736
          %2742 = dma.vmem_to_hbm [thread:$0]  %s2737, 1024, %s2735, %s2723, 256, 256, 16
        $region44: #{tpu_custom_call.1} parent=31 // pred_fallthru
          _
      $region32: #{tpu_custom_call.1} parent=5 // pred_fallthru
        _
      %p2743 = scmp.le.s32.totalorder 2, %s16
      // Predicated region
      $region45: #{tpu_custom_call.1} parent=5 // pred_check
        %p2744 = pneg %p2743
      $region46: #{tpu_custom_call.1} parent=5 // pred_check_branch
        %2746 = sbr.rel (%p2744) target = $region48
      $region47: #{tpu_custom_call.1} parent=5 // pred_region
        %s2747 = ssub.s32 %s16, 2
        // Predicated region
        $region49: #{tpu_custom_call.1} parent=47 // pred_check
          %p2748 = pneg %p113
        $region50: #{tpu_custom_call.1} parent=47 // pred_check_branch
          %2750 = sbr.rel (%p2748) target = $region52
        $region51: #{tpu_custom_call.1} parent=47 // pred_region
          %s2751 = sand.u32 %s98, 1
          %s2752 = scalar_lea.sflag [#allocation4], %s2751
          %s2753 = sand.u32 %s98, 1
          %s2754 = smul.addr %s2753, 64
          %s2755 = scalar_lea.vmem [#allocation7], %s2754
          %2756 = dma.done %s2752, 1024
        $region52: #{tpu_custom_call.1} parent=47 // pred_fallthru
          _
      $region48: #{tpu_custom_call.1} parent=5 // pred_fallthru
        _
    $region6: #{tpu_custom_call.1} parent=1 // loop_footer
      %s20 = sadd.s32 1, %s16
    $region7: #{tpu_custom_call.1} parent=1 // loop_footer_branch
      %15 = sbr.rel target = $region3
    $region8: #{tpu_custom_call.1} parent=1 // loop_exit
      _
    %2757 = vsyncpa [#allocation3], 1
    %s2758 = scalar_lea.sflag [#allocation3], 1
    %2759 = vsyncpa %s2758, 1
    %2760 = vsyncpa [#allocation6], 1
    %2761 = vsyncpa [#allocation4], 1
    %s2762 = scalar_lea.sflag [#allocation4], 1
    %2763 = vsyncpa %s2762, 1

</llo_original>
